<compile_context>
chip_gen: v7x
topology: tpu7x:2x2x1
jax: 0.10.0
libtpu: 0.0.40
codegen_flags: <defaults>
</compile_context>

<pallas_src>
import functools

import jax
import jax.numpy as jnp
from jax.experimental import pallas as pl
from jax.experimental.pallas import tpu as pltpu


def _round_up(x, m):
    return (x + m - 1) // m * m


def _num_tensorcores():
    """Best-effort TensorCore count of device 0 (used only for row-tile splitting)."""
    try:
        dev = jax.devices()[0]
        for attr in ("num_cores", "core_count"):
            v = getattr(dev, attr, None)
            if isinstance(v, int) and v > 0:
                return min(2, v)
    except Exception:
        pass
    return 1


def _vmem_estimate_bytes(rt, d_in, hid_p, d_out_p, w_itemsize):
    """Rough resident-VMEM budget for this kernel (bytes).

    Single-buffered weights + biases, double-buffered x/out row tiles,
    plus the live f32 intermediate activations.
    """
    weights = (d_in * hid_p + 2 * hid_p * hid_p + hid_p * d_out_p) * w_itemsize
    biases = (3 * hid_p + d_out_p) * 4
    x_bufs = 2 * rt * d_in * 4
    o_bufs = 2 * rt * d_out_p * 4
    live = 2 * rt * hid_p * 4
    return weights + biases + x_bufs + o_bufs + live


def _mlp_kernel(x_ref,
                w1_ref, b1_ref,
                w2_ref, b2_ref,
                w3_ref, b3_ref,
                w4_ref, b4_ref,
                o_ref):
    """Fused 4-layer MLP on one row-tile of x; all padded weights VMEM-resident."""
    wdt = w1_ref.dtype

    def dense(a, w_ref, b_ref):
        # MXU matmul with f32 accumulation; bias-add / ReLU stay f32 on the VPU.
        return jnp.dot(a.astype(wdt), w_ref[...],
                       preferred_element_type=jnp.float32) + b_ref[...]

    h = jnp.maximum(dense(x_ref[...], w1_ref, b1_ref), 0.0)
    h = jnp.maximum(dense(h, w2_ref, b2_ref), 0.0)
    h = jnp.maximum(dense(h, w3_ref, b3_ref), 0.0)
    o_ref[...] = dense(h, w4_ref, b4_ref).astype(o_ref.dtype)


def prepare_params(params, *, lane_pad=128, dtype=jnp.float32):
    """One-time padding (and optional cast) of the weights/biases.

    Hidden/output feature dims are zero-padded to multiples of `lane_pad`
    (lane-dense MXU pushes and unmasked output stores). The input feature dim
    is left unpadded: x streams through the kernel at its true width.
    Returns (padded_param_dict, output_dim).
    """
    d_in, hidden = params["w1"].shape
    d_out = params["w4"].shape[1]
    hid_p = _round_up(hidden, lane_pad)
    d_out_p = _round_up(d_out, lane_pad)

    def pad_w(w, in_p, out_p):
        wi, wo = w.shape
        return jnp.pad(w, ((0, in_p - wi), (0, out_p - wo))).astype(dtype)

    def pad_b(b, out_p):
        # Biases stay f32: the bias-add / ReLU epilogue runs in f32 on the VPU.
        return jnp.pad(b, ((0, 0), (0, out_p - b.shape[1])))

    padded = {
        "w1": pad_w(params["w1"], d_in, hid_p),
        "w2": pad_w(params["w2"], hid_p, hid_p),
        "w3": pad_w(params["w3"], hid_p, hid_p),
        "w4": pad_w(params["w4"], hid_p, d_out_p),
        "b1": pad_b(params["b1"], hid_p),
        "b2": pad_b(params["b2"], hid_p),
        "b3": pad_b(params["b3"], hid_p),
        "b4": pad_b(params["b4"], d_out_p),
    }
    return padded, d_out


@functools.partial(jax.jit, static_argnames=("out_dim", "row_tile_cap", "n_splits"))
def mlp_forward(x, padded_params, *, out_dim, row_tile_cap=512, n_splits=1):
    """x: (N, input_dim) f32. padded_params: output of prepare_params()[0]."""
    n, d_in = x.shape
    w1 = padded_params["w1"]
    w2 = padded_params["w2"]
    w3 = padded_params["w3"]
    w4 = padded_params["w4"]
    b1 = padded_params["b1"]
    b2 = padded_params["b2"]
    b3 = padded_params["b3"]
    b4 = padded_params["b4"]
    assert w1.shape[0] == d_in, "w1 in-dim must match x feature dim (unpadded)"
    hid_p = w1.shape[1]
    d_out_p = w4.shape[1]

    # Row tile derived from N: one tile per TensorCore split, rounded to the
    # 8-row sublane tile, capped for very large N. Minimal zero-row padding.
    rt = min(row_tile_cap, _round_up(pl.cdiv(n, max(1, n_splits)), 8))
    n_p = _round_up(n, rt)
    grid = (n_p // rt,)

    x_p = x if n_p == n else jnp.pad(x, ((0, n_p - n), (0, 0)))

    # VMEM budget: raise the scoped limit only when the default (~32 MiB) is
    # too small. ~56 MiB is the practical ceiling on v7x (64 MiB physical);
    # past that, tile the hidden dim with a second grid axis instead.
    est = _vmem_estimate_bytes(rt, d_in, hid_p, d_out_p, w1.dtype.itemsize)
    vmem_limit = None
    if est > 24 * 1024 * 1024:
        vmem_limit = min(int(est * 3 // 2), 56 * 1024 * 1024)

    def row_spec(width):
        return pl.BlockSpec((rt, width), lambda i: (i, 0))

    def resident_spec(arr):
        # Constant index_map -> fetched once; single-buffered so only one VMEM
        # copy of each weight/bias is resident.
        return pl.BlockSpec(arr.shape, lambda i: (0, 0),
                            pipeline_mode=pl.Buffered(1))

    out_p = pl.pallas_call(
        _mlp_kernel,
        out_shape=jax.ShapeDtypeStruct((n_p, d_out_p), x.dtype),
        grid_spec=pltpu.PrefetchScalarGridSpec(
            num_scalar_prefetch=0,
            grid=grid,
            in_specs=[
                row_spec(d_in),
                resident_spec(w1), resident_spec(b1),
                resident_spec(w2), resident_spec(b2),
                resident_spec(w3), resident_spec(b3),
                resident_spec(w4), resident_spec(b4),
            ],
            out_specs=row_spec(d_out_p),
        ),
        compiler_params=pltpu.CompilerParams(
            # Row axis is independent across tiles. NOTE(v7x): if a trace shows
            # only one TensorCore busy, switch to an explicit core split
            # (leading size-2 grid axis with pltpu.CORE_PARALLEL, or
            # pl.core_map over pltpu.create_tensorcore_mesh).
            dimension_semantics=("parallel",),
            vmem_limit_bytes=vmem_limit,
        ),
    )(x_p, w1, b1, w2, b2, w3, b3, w4, b4)

    # Strip row / output-feature padding.
    return out_p[:n, :out_dim]


def init_mlp_params(key, input_dim, hidden_dim, output_dim):
    """Deterministic init mimicking nn.Linear default (uniform +/- 1/sqrt(fan_in)).
    Weights are stored as (in_features, out_features)."""
    dims = [(input_dim, hidden_dim),
            (hidden_dim, hidden_dim),
            (hidden_dim, hidden_dim),
            (hidden_dim, output_dim)]
    params = {}
    keys = jax.random.split(key, 2 * len(dims))
    for idx, (fan_in, fan_out) in enumerate(dims):
        bound = 1.0 / float(fan_in) ** 0.5
        w = jax.random.uniform(keys[2 * idx], (fan_in, fan_out),
                               jnp.float32, minval=-bound, maxval=bound)
        b = jax.random.uniform(keys[2 * idx + 1], (1, fan_out),
                               jnp.float32, minval=-bound, maxval=bound)
        params[f"w{idx + 1}"] = w
        params[f"b{idx + 1}"] = b
    return params


def mlp_reference(x, params):
    h = jax.nn.relu(x @ params["w1"] + params["b1"])
    h = jax.nn.relu(h @ params["w2"] + params["b2"])
    h = jax.nn.relu(h @ params["w3"] + params["b3"])
    return h @ params["w4"] + params["b4"]


if __name__ == "__main__":
    # Graph-node feature matrix: N nodes (non-multiple of 8 / of the row tile to
    # exercise the padding path), small feature dims consistent with the module.
    N, INPUT_DIM, HIDDEN_DIM, OUTPUT_DIM = 300, 16, 32, 8

    key = jax.random.PRNGKey(0)
    k_x, k_p = jax.random.split(key)

    x = jax.random.normal(k_x, (N, INPUT_DIM), dtype=jnp.float32)
    params = init_mlp_params(k_p, INPUT_DIM, HIDDEN_DIM, OUTPUT_DIM)

    # One-time weight/bias padding (hoisted out of the per-call forward).
    padded_params, out_dim = prepare_params(params)

    out = mlp_forward(x, padded_params, out_dim=out_dim,
                      n_splits=_num_tensorcores())
    out = jax.block_until_ready(out)

    ref = mlp_reference(x, params)
    assert out.shape == (N, OUTPUT_DIM)
    err = float(jnp.max(jnp.abs(out - ref)))
    assert jnp.allclose(out, ref, atol=2e-2, rtol=2e-2), f"max abs err {err}"

    print("KERNEL_OK")
</pallas_src>

<mosaic_0001>
module attributes {stable_mosaic.version = 11 : i64} {
  func.func @_mlp_kernel(%arg0: i32, %arg1: memref<304x16xf32, #tpu.memory_space<vmem>>, %arg2: memref<16x128xf32, #tpu.memory_space<vmem>>, %arg3: memref<1x128xf32, #tpu.memory_space<vmem>>, %arg4: memref<128x128xf32, #tpu.memory_space<vmem>>, %arg5: memref<1x128xf32, #tpu.memory_space<vmem>>, %arg6: memref<128x128xf32, #tpu.memory_space<vmem>>, %arg7: memref<1x128xf32, #tpu.memory_space<vmem>>, %arg8: memref<128x128xf32, #tpu.memory_space<vmem>>, %arg9: memref<1x128xf32, #tpu.memory_space<vmem>>, %arg10: memref<304x128xf32, #tpu.memory_space<vmem>>) attributes {dimension_semantics = [#tpu.dimension_semantics<parallel>], iteration_bounds = array<i64: 1>, scalar_prefetch = 0 : i64, scratch_operands = 0 : i64, tpu.core_type = #tpu.core_type<tc>, window_params = [{transform_indices = @transform_0, window_bounds = array<i64: 304, 16>}, {pipeline_mode = #tpu.pipeline_mode<synchronous>, transform_indices = @transform_1, window_bounds = array<i64: 16, 128>}, {pipeline_mode = #tpu.pipeline_mode<synchronous>, transform_indices = @transform_2, window_bounds = array<i64: 1, 128>}, {pipeline_mode = #tpu.pipeline_mode<synchronous>, transform_indices = @transform_3, window_bounds = array<i64: 128, 128>}, {pipeline_mode = #tpu.pipeline_mode<synchronous>, transform_indices = @transform_4, window_bounds = array<i64: 1, 128>}, {pipeline_mode = #tpu.pipeline_mode<synchronous>, transform_indices = @transform_5, window_bounds = array<i64: 128, 128>}, {pipeline_mode = #tpu.pipeline_mode<synchronous>, transform_indices = @transform_6, window_bounds = array<i64: 1, 128>}, {pipeline_mode = #tpu.pipeline_mode<synchronous>, transform_indices = @transform_7, window_bounds = array<i64: 128, 128>}, {pipeline_mode = #tpu.pipeline_mode<synchronous>, transform_indices = @transform_8, window_bounds = array<i64: 1, 128>}, {transform_indices = @transform_9, window_bounds = array<i64: 304, 128>}]} {
    %c0 = arith.constant 0 : index
    %c0_0 = arith.constant 0 : index
    %0 = vector.load %arg1[%c0, %c0_0] : memref<304x16xf32, #tpu.memory_space<vmem>>, vector<304x16xf32>
    %c0_1 = arith.constant 0 : index
    %c0_2 = arith.constant 0 : index
    %1 = vector.load %arg2[%c0_1, %c0_2] : memref<16x128xf32, #tpu.memory_space<vmem>>, vector<16x128xf32>
    %cst = arith.constant dense<0.000000e+00> : vector<304x128xf32>
    %2 = tpu.matmul %0, %1, %cst {dimension_numbers = #tpu.dot_dimension_numbers<[1], [0], [0], [1], [0, 0, 1, 1], [], []>} : vector<304x16xf32>, vector<16x128xf32>, vector<304x128xf32> -> vector<304x128xf32>
    %c0_3 = arith.constant 0 : index
    %c0_4 = arith.constant 0 : index
    %3 = vector.load %arg3[%c0_3, %c0_4] : memref<1x128xf32, #tpu.memory_space<vmem>>, vector<1x128xf32>
    %4 = vector.broadcast %3 : vector<1x128xf32> to vector<304x128xf32>
    %5 = arith.addf %2, %4 : vector<304x128xf32>
    %cst_5 = arith.constant 0.000000e+00 : f32
    %6 = vector.broadcast %cst_5 : f32 to vector<304x128xf32>
    %7 = arith.maximumf %5, %6 : vector<304x128xf32>
    %c0_6 = arith.constant 0 : index
    %c0_7 = arith.constant 0 : index
    %8 = vector.load %arg4[%c0_6, %c0_7] : memref<128x128xf32, #tpu.memory_space<vmem>>, vector<128x128xf32>
    %cst_8 = arith.constant dense<0.000000e+00> : vector<304x128xf32>
    %9 = tpu.matmul %7, %8, %cst_8 {dimension_numbers = #tpu.dot_dimension_numbers<[1], [0], [0], [1], [0, 0, 1, 1], [], []>} : vector<304x128xf32>, vector<128x128xf32>, vector<304x128xf32> -> vector<304x128xf32>
    %c0_9 = arith.constant 0 : index
    %c0_10 = arith.constant 0 : index
    %10 = vector.load %arg5[%c0_9, %c0_10] : memref<1x128xf32, #tpu.memory_space<vmem>>, vector<1x128xf32>
    %11 = vector.broadcast %10 : vector<1x128xf32> to vector<304x128xf32>
    %12 = arith.addf %9, %11 : vector<304x128xf32>
    %cst_11 = arith.constant 0.000000e+00 : f32
    %13 = vector.broadcast %cst_11 : f32 to vector<304x128xf32>
    %14 = arith.maximumf %12, %13 : vector<304x128xf32>
    %c0_12 = arith.constant 0 : index
    %c0_13 = arith.constant 0 : index
    %15 = vector.load %arg6[%c0_12, %c0_13] : memref<128x128xf32, #tpu.memory_space<vmem>>, vector<128x128xf32>
    %cst_14 = arith.constant dense<0.000000e+00> : vector<304x128xf32>
    %16 = tpu.matmul %14, %15, %cst_14 {dimension_numbers = #tpu.dot_dimension_numbers<[1], [0], [0], [1], [0, 0, 1, 1], [], []>} : vector<304x128xf32>, vector<128x128xf32>, vector<304x128xf32> -> vector<304x128xf32>
    %c0_15 = arith.constant 0 : index
    %c0_16 = arith.constant 0 : index
    %17 = vector.load %arg7[%c0_15, %c0_16] : memref<1x128xf32, #tpu.memory_space<vmem>>, vector<1x128xf32>
    %18 = vector.broadcast %17 : vector<1x128xf32> to vector<304x128xf32>
    %19 = arith.addf %16, %18 : vector<304x128xf32>
    %cst_17 = arith.constant 0.000000e+00 : f32
    %20 = vector.broadcast %cst_17 : f32 to vector<304x128xf32>
    %21 = arith.maximumf %19, %20 : vector<304x128xf32>
    %c0_18 = arith.constant 0 : index
    %c0_19 = arith.constant 0 : index
    %22 = vector.load %arg8[%c0_18, %c0_19] : memref<128x128xf32, #tpu.memory_space<vmem>>, vector<128x128xf32>
    %cst_20 = arith.constant dense<0.000000e+00> : vector<304x128xf32>
    %23 = tpu.matmul %21, %22, %cst_20 {dimension_numbers = #tpu.dot_dimension_numbers<[1], [0], [0], [1], [0, 0, 1, 1], [], []>} : vector<304x128xf32>, vector<128x128xf32>, vector<304x128xf32> -> vector<304x128xf32>
    %c0_21 = arith.constant 0 : index
    %c0_22 = arith.constant 0 : index
    %24 = vector.load %arg9[%c0_21, %c0_22] : memref<1x128xf32, #tpu.memory_space<vmem>>, vector<1x128xf32>
    %25 = vector.broadcast %24 : vector<1x128xf32> to vector<304x128xf32>
    %26 = arith.addf %23, %25 : vector<304x128xf32>
    %c0_23 = arith.constant 0 : index
    %c0_24 = arith.constant 0 : index
    %27 = vector.load %arg10[%c0_23, %c0_24] : memref<304x128xf32, #tpu.memory_space<vmem>>, vector<304x128xf32>
    tpu.vector_store %arg10[%c0_23, %c0_24], %26 {strides = array<i32>} : memref<304x128xf32, #tpu.memory_space<vmem>>, vector<304x128xf32>,
    return
  }
  func.func @transform_0(%arg0: i32) -> (i32, i32) {
    %c0_i32 = arith.constant 0 : i32
    %c0_i32_0 = arith.constant 0 : i32
    return %arg0, %c0_i32 : i32, i32
  }
  func.func @transform_1(%arg0: i32) -> (i32, i32) {
    %c0_i32 = arith.constant 0 : i32
    %c0_i32_0 = arith.constant 0 : i32
    %c0_i32_1 = arith.constant 0 : i32
    return %c0_i32, %c0_i32_0 : i32, i32
  }
  func.func @transform_2(%arg0: i32) -> (i32, i32) {
    %c0_i32 = arith.constant 0 : i32
    %c0_i32_0 = arith.constant 0 : i32
    %c0_i32_1 = arith.constant 0 : i32
    return %c0_i32, %c0_i32_0 : i32, i32
  }
  func.func @transform_3(%arg0: i32) -> (i32, i32) {
    %c0_i32 = arith.constant 0 : i32
    %c0_i32_0 = arith.constant 0 : i32
    %c0_i32_1 = arith.constant 0 : i32
    return %c0_i32, %c0_i32_0 : i32, i32
  }
  func.func @transform_4(%arg0: i32) -> (i32, i32) {
    %c0_i32 = arith.constant 0 : i32
    %c0_i32_0 = arith.constant 0 : i32
    %c0_i32_1 = arith.constant 0 : i32
    return %c0_i32, %c0_i32_0 : i32, i32
  }
  func.func @transform_5(%arg0: i32) -> (i32, i32) {
    %c0_i32 = arith.constant 0 : i32
    %c0_i32_0 = arith.constant 0 : i32
    %c0_i32_1 = arith.constant 0 : i32
    return %c0_i32, %c0_i32_0 : i32, i32
  }
  func.func @transform_6(%arg0: i32) -> (i32, i32) {
    %c0_i32 = arith.constant 0 : i32
    %c0_i32_0 = arith.constant 0 : i32
    %c0_i32_1 = arith.constant 0 : i32
    return %c0_i32, %c0_i32_0 : i32, i32
  }
  func.func @transform_7(%arg0: i32) -> (i32, i32) {
    %c0_i32 = arith.constant 0 : i32
    %c0_i32_0 = arith.constant 0 : i32
    %c0_i32_1 = arith.constant 0 : i32
    return %c0_i32, %c0_i32_0 : i32, i32
  }
  func.func @transform_8(%arg0: i32) -> (i32, i32) {
    %c0_i32 = arith.constant 0 : i32
    %c0_i32_0 = arith.constant 0 : i32
    %c0_i32_1 = arith.constant 0 : i32
    return %c0_i32, %c0_i32_0 : i32, i32
  }
  func.func @transform_9(%arg0: i32) -> (i32, i32) {
    %c0_i32 = arith.constant 0 : i32
    %c0_i32_0 = arith.constant 0 : i32
    return %arg0, %c0_i32 : i32, i32
  }
}

</mosaic_0001>

<llo_original>
// kernel: mlp_forward.1
$region0: #{mlp_forward.1}
  #allocation0 [shape = 'u32[]', space=smem, size = 0x4, offset = 0x4, fixed_abs, tag = 'smem constant byte address 0x4 - core index']
  #allocation1 [shape = 'u32[144,128]{1,0:T(1,128)}', space=vmem, size = 0x12000, scoped, tag = 'internal scratch']
  %s0 = inlined_call_operand.vmem [shape: f32[304,16], index: 0, kind: input, shape index: {}]
  %s1 = inlined_call_operand.vmem [shape: f32[16,128], index: 1, kind: input, shape index: {}]
  %s2 = inlined_call_operand.vmem [shape: f32[1,128], index: 2, kind: input, shape index: {}]
  %s3 = inlined_call_operand.vmem [shape: f32[128,128], index: 3, kind: input, shape index: {}]
  %s4 = inlined_call_operand.vmem [shape: f32[1,128], index: 4, kind: input, shape index: {}]
  %s5 = inlined_call_operand.vmem [shape: f32[128,128], index: 5, kind: input, shape index: {}]
  %s6 = inlined_call_operand.vmem [shape: f32[1,128], index: 6, kind: input, shape index: {}]
  %s7 = inlined_call_operand.vmem [shape: f32[128,128], index: 7, kind: input, shape index: {}]
  %s8 = inlined_call_operand.vmem [shape: f32[1,128], index: 8, kind: input, shape index: {}]
  %s9 = inlined_call_operand.vmem [shape: f32[304,128], index: 9, kind: output, shape index: {}]
  %s10 = sld [smem:[#allocation0]]
  $region46: #{mlp_forward.1} parent=0
    _
  %s12 = ssub.s32 1, %s10
  %s13 = scalar_select 0, %s12, %s10
  // Predicated region
  $region2: #{mlp_forward.1} parent=0 // pred_check
    _
  $region3: #{mlp_forward.1} parent=0 // pred_check_branch
    %15 = sbr.rel (0) target = $region5
  $region4: #{mlp_forward.1} parent=0 // pred_region
    _
  $region5: #{mlp_forward.1} parent=0 // pred_fallthru
    _
  // Predicated region
  $region6: #{mlp_forward.1} parent=0 // pred_check
    _
  $region7: #{mlp_forward.1} parent=0 // pred_check_branch
    %17 = sbr.rel (0) target = $region9
  $region8: #{mlp_forward.1} parent=0 // pred_region
    _
  $region9: #{mlp_forward.1} parent=0 // pred_fallthru
    _
  // Predicated region
  $region10: #{mlp_forward.1} parent=0 // pred_check
    _
  $region11: #{mlp_forward.1} parent=0 // pred_check_branch
    %19 = sbr.rel (0) target = $region13
  $region12: #{mlp_forward.1} parent=0 // pred_region
    _
  $region13: #{mlp_forward.1} parent=0 // pred_fallthru
    _
  // Predicated region
  $region14: #{mlp_forward.1} parent=0 // pred_check
    _
  $region15: #{mlp_forward.1} parent=0 // pred_check_branch
    %21 = sbr.rel (0) target = $region17
  $region16: #{mlp_forward.1} parent=0 // pred_region
    _
  $region17: #{mlp_forward.1} parent=0 // pred_fallthru
    _
  // Predicated region
  $region18: #{mlp_forward.1} parent=0 // pred_check
    _
  $region19: #{mlp_forward.1} parent=0 // pred_check_branch
    %23 = sbr.rel (0) target = $region21
  $region20: #{mlp_forward.1} parent=0 // pred_region
    _
  $region21: #{mlp_forward.1} parent=0 // pred_fallthru
    _
  // Predicated region
  $region22: #{mlp_forward.1} parent=0 // pred_check
    _
  $region23: #{mlp_forward.1} parent=0 // pred_check_branch
    %25 = sbr.rel (0) target = $region25
  $region24: #{mlp_forward.1} parent=0 // pred_region
    _
  $region25: #{mlp_forward.1} parent=0 // pred_fallthru
    _
  // Predicated region
  $region26: #{mlp_forward.1} parent=0 // pred_check
    _
  $region27: #{mlp_forward.1} parent=0 // pred_check_branch
    %27 = sbr.rel (0) target = $region29
  $region28: #{mlp_forward.1} parent=0 // pred_region
    _
  $region29: #{mlp_forward.1} parent=0 // pred_fallthru
    _
  // Predicated region
  $region30: #{mlp_forward.1} parent=0 // pred_check
    _
  $region31: #{mlp_forward.1} parent=0 // pred_check_branch
    %29 = sbr.rel (0) target = $region33
  $region32: #{mlp_forward.1} parent=0 // pred_region
    _
  $region33: #{mlp_forward.1} parent=0 // pred_fallthru
    _
  // Predicated region
  $region34: #{mlp_forward.1} parent=0 // pred_check
    _
  $region35: #{mlp_forward.1} parent=0 // pred_check_branch
    %31 = sbr.rel (0) target = $region37
  $region36: #{mlp_forward.1} parent=0 // pred_region
    _
  $region37: #{mlp_forward.1} parent=0 // pred_fallthru
    _
  %v32 = vld [vmem:[%s0] sm:$0xff]
  %v33 = vld [vmem:[%s0 + $0x8] sm:$0xff]
  %v34 = vld [vmem:[%s0 + $0x10] sm:$0xff]
  %v35 = vld [vmem:[%s0 + $0x18] sm:$0xff]
  %v36 = vld [vmem:[%s0 + $0x20] sm:$0xff]
  %v37 = vld [vmem:[%s0 + $0x28] sm:$0xff]
  %v38 = vld [vmem:[%s0 + $0x30] sm:$0xff]
  %v39 = vld [vmem:[%s0 + $0x38] sm:$0xff]
  %v40 = vld [vmem:[%s0 + $0x40] sm:$0xff]
  %v41 = vld [vmem:[%s0 + $0x48] sm:$0xff]
  %v42 = vld [vmem:[%s0 + $0x50] sm:$0xff]
  %v43 = vld [vmem:[%s0 + $0x58] sm:$0xff]
  %v44 = vld [vmem:[%s0 + $0x60] sm:$0xff]
  %v45 = vld [vmem:[%s0 + $0x68] sm:$0xff]
  %v46 = vld [vmem:[%s0 + $0x70] sm:$0xff]
  %v47 = vld [vmem:[%s0 + $0x78] sm:$0xff]
  %v48 = vld [vmem:[%s0 + $0x80] sm:$0xff]
  %v49 = vld [vmem:[%s0 + $0x88] sm:$0xff]
  %v50 = vld [vmem:[%s0 + $0x90] sm:$0xff]
  %v51 = vld [vmem:[%s0 + $0x98] sm:$0xff]
  %v52 = vld [vmem:[%s0 + $0xa0] sm:$0xff]
  %v53 = vld [vmem:[%s0 + $0xa8] sm:$0xff]
  %v54 = vld [vmem:[%s0 + $0xb0] sm:$0xff]
  %v55 = vld [vmem:[%s0 + $0xb8] sm:$0xff]
  %v56 = vld [vmem:[%s0 + $0xc0] sm:$0xff]
  %v57 = vld [vmem:[%s0 + $0xc8] sm:$0xff]
  %v58 = vld [vmem:[%s0 + $0xd0] sm:$0xff]
  %v59 = vld [vmem:[%s0 + $0xd8] sm:$0xff]
  %v60 = vld [vmem:[%s0 + $0xe0] sm:$0xff]
  %v61 = vld [vmem:[%s0 + $0xe8] sm:$0xff]
  %v62 = vld [vmem:[%s0 + $0xf0] sm:$0xff]
  %v63 = vld [vmem:[%s0 + $0xf8] sm:$0xff]
  %v64 = vld [vmem:[%s0 + $0x100] sm:$0xff]
  %v65 = vld [vmem:[%s0 + $0x108] sm:$0xff]
  %v66 = vld [vmem:[%s0 + $0x110] sm:$0xff]
  %v67 = vld [vmem:[%s0 + $0x118] sm:$0xff]
  %v68 = vld [vmem:[%s0 + $0x120] sm:$0xff]
  %v69 = vld [vmem:[%s0 + $0x128] sm:$0xff]
  %v70 = vld [vmem:[%s1] sm:$0xff]
  %v71 = vld [vmem:[%s1 + $0x8] sm:$0xff]
  %v72 = vld [vmem:[%s2] sm:$0x1]
  %v74 = vlaneseq
  %v75 = vshrl.u32 %v74, 7
  %v76 = vsub.s32 0, %v75
  %v77 = vrot.slane %v72, %v76
  %vm79 = vcmask 130048
  %v81 = vsel %vm79, %v32, 0
  %v84 = vsel %vm79, %v33, 0
  %v87 = vsel %vm79, %v34, 0
  %v90 = vsel %vm79, %v35, 0
  %v93 = vsel %vm79, %v36, 0
  %v96 = vsel %vm79, %v37, 0
  %v99 = vsel %vm79, %v38, 0
  %v102 = vsel %vm79, %v39, 0
  %v105 = vsel %vm79, %v40, 0
  %v108 = vsel %vm79, %v41, 0
  %v111 = vsel %vm79, %v42, 0
  %v114 = vsel %vm79, %v43, 0
  %v117 = vsel %vm79, %v44, 0
  %v120 = vsel %vm79, %v45, 0
  %v123 = vsel %vm79, %v46, 0
  %v126 = vsel %vm79, %v47, 0
  %v129 = vsel %vm79, %v48, 0
  %v132 = vsel %vm79, %v49, 0
  %v135 = vsel %vm79, %v50, 0
  %v138 = vsel %vm79, %v51, 0
  %v141 = vsel %vm79, %v52, 0
  %v144 = vsel %vm79, %v53, 0
  %v147 = vsel %vm79, %v54, 0
  %v150 = vsel %vm79, %v55, 0
  %v153 = vsel %vm79, %v56, 0
  %v156 = vsel %vm79, %v57, 0
  %v159 = vsel %vm79, %v58, 0
  %v162 = vsel %vm79, %v59, 0
  %v165 = vsel %vm79, %v60, 0
  %v168 = vsel %vm79, %v61, 0
  %v171 = vsel %vm79, %v62, 0
  %v174 = vsel %vm79, %v63, 0
  %v177 = vsel %vm79, %v64, 0
  %v180 = vsel %vm79, %v65, 0
  %v183 = vsel %vm79, %v66, 0
  %v186 = vsel %vm79, %v67, 0
  %v189 = vsel %vm79, %v68, 0
  %v192 = vsel %vm79, %v69, 0
  %194 = vmatprep.subr.mxu0 0.0
  %195 = vmatpush1.msra.mxu0 %v70
  %196 = vmatprep.subr.mxu0 0.0
  %197 = vmatpush1.msra.mxu0 %v71
  %198 = vmatprep.subr.mxu0 0.0
  %199 = vmatpush1.msra.mxu0 0.0
  %200 = vmatprep.subr.mxu0 0.0
  %201 = vmatpush1.msra.mxu0 0.0
  %202 = vmatprep.subr.mxu0 0.0
  %203 = vmatpush1.msra.mxu0 0.0
  %204 = vmatprep.subr.mxu0 0.0
  %205 = vmatpush1.msra.mxu0 0.0
  %206 = vmatprep.subr.mxu0 0.0
  %207 = vmatpush1.msra.mxu0 0.0
  %208 = vmatprep.subr.mxu0 0.0
  %209 = vmatpush1.msra.mxu0 0.0
  %210 = vmatprep.subr.mxu0 0.0
  %211 = vmatpush1.msra.mxu0 0.0
  %212 = vmatprep.subr.mxu0 0.0
  %213 = vmatpush1.msra.mxu0 0.0
  %214 = vmatprep.subr.mxu0 0.0
  %215 = vmatpush1.msra.mxu0 0.0
  %216 = vmatprep.subr.mxu0 0.0
  %217 = vmatpush1.msra.mxu0 0.0
  %218 = vmatprep.subr.mxu0 0.0
  %219 = vmatpush1.msra.mxu0 0.0
  %220 = vmatprep.subr.mxu0 0.0
  %221 = vmatpush1.msra.mxu0 0.0
  %222 = vmatprep.subr.mxu0 0.0
  %223 = vmatpush1.msra.mxu0 0.0
  %224 = vmatprep.subr.mxu0 0.0
  %225 = vmatpush1.msra.mxu0 0.0
  %226 = vmatprep.subr.mxu0 0.0
  %227 = vmatpush1.msra.mxu0 0.0
  %228 = vmatprep.subr.mxu0 0.0
  %229 = vmatpush1.msra.mxu0 0.0
  %230 = vmatprep.subr.mxu0 0.0
  %231 = vmatpush1.msra.mxu0 0.0
  %232 = vmatprep.subr.mxu0 0.0
  %233 = vmatpush1.msra.mxu0 0.0
  %234 = vmatprep.subr.mxu0 0.0
  %235 = vmatpush1.msra.mxu0 0.0
  %236 = vmatprep.subr.mxu0 0.0
  %237 = vmatpush1.msra.mxu0 0.0
  %238 = vmatprep.subr.mxu0 0.0
  %239 = vmatpush1.msra.mxu0 0.0
  %240 = vmatprep.subr.mxu0 0.0
  %241 = vmatpush1.msra.mxu0 0.0
  %242 = vmatprep.subr.mxu0 0.0
  %243 = vmatpush1.msra.mxu0 0.0
  %244 = vmatprep.subr.mxu0 0.0
  %245 = vmatpush1.msra.mxu0 0.0
  %246 = vmatprep.subr.mxu0 0.0
  %247 = vmatpush1.msra.mxu0 0.0
  %248 = vmatprep.subr.mxu0 0.0
  %249 = vmatpush1.msra.mxu0 0.0
  %250 = vmatprep.subr.mxu0 0.0
  %251 = vmatpush1.msra.mxu0 0.0
  %252 = vmatprep.subr.mxu0 0.0
  %253 = vmatpush1.msra.mxu0 0.0
  %254 = vmatprep.subr.mxu0 0.0
  %255 = vmatpush1.msra.mxu0 0.0
  %256 = vmatprep.subr.mxu0 0.0
  %257 = vmatpush1.msra.mxu0 0.0
  %258 = vmatprep.mubr.f32.mxu0 0.0
  %259 = vmatmul.mubr.f32.gmra.mrb[0].mxu0 %v81
  %v260 = vpop.f32.mrb[0].mxu0
  %v261 = vadd.f32 %v77, %v260
  %v262 = vpop.f32.mrb[0].mxu0
  %263 = vmatprep.mubr.f32.mxu0 0.0
  %264 = vmatmul.mubr.f32.gmra.mrb[0].mxu0 %v84
  %v265 = vpop.f32.mrb[0].mxu0
  %v266 = vadd.f32 %v77, %v265
  %v267 = vpop.f32.mrb[0].mxu0
  %268 = vmatprep.mubr.f32.mxu0 0.0
  %269 = vmatmul.mubr.f32.gmra.mrb[0].mxu0 %v87
  %v270 = vpop.f32.mrb[0].mxu0
  %v271 = vadd.f32 %v77, %v270
  %v272 = vpop.f32.mrb[0].mxu0
  %273 = vmatprep.mubr.f32.mxu0 0.0
  %274 = vmatmul.mubr.f32.gmra.mrb[0].mxu0 %v90
  %v275 = vpop.f32.mrb[0].mxu0
  %v276 = vadd.f32 %v77, %v275
  %v277 = vpop.f32.mrb[0].mxu0
  %278 = vmatprep.mubr.f32.mxu0 0.0
  %279 = vmatmul.mubr.f32.gmra.mrb[0].mxu0 %v93
  %v280 = vpop.f32.mrb[0].mxu0
  %v281 = vadd.f32 %v77, %v280
  %v282 = vpop.f32.mrb[0].mxu0
  %283 = vmatprep.mubr.f32.mxu0 0.0
  %284 = vmatmul.mubr.f32.gmra.mrb[0].mxu0 %v96
  %v285 = vpop.f32.mrb[0].mxu0
  %v286 = vadd.f32 %v77, %v285
  %v287 = vpop.f32.mrb[0].mxu0
  %288 = vmatprep.mubr.f32.mxu0 0.0
  %289 = vmatmul.mubr.f32.gmra.mrb[0].mxu0 %v99
  %v290 = vpop.f32.mrb[0].mxu0
  %v291 = vadd.f32 %v77, %v290
  %v292 = vpop.f32.mrb[0].mxu0
  %293 = vmatprep.mubr.f32.mxu0 0.0
  %294 = vmatmul.mubr.f32.gmra.mrb[0].mxu0 %v102
  %v295 = vpop.f32.mrb[0].mxu0
  %v296 = vadd.f32 %v77, %v295
  %v297 = vpop.f32.mrb[0].mxu0
  %298 = vmatprep.mubr.f32.mxu0 0.0
  %299 = vmatmul.mubr.f32.gmra.mrb[0].mxu0 %v105
  %v300 = vpop.f32.mrb[0].mxu0
  %v301 = vadd.f32 %v77, %v300
  %v302 = vpop.f32.mrb[0].mxu0
  %303 = vmatprep.mubr.f32.mxu0 0.0
  %304 = vmatmul.mubr.f32.gmra.mrb[0].mxu0 %v108
  %v305 = vpop.f32.mrb[0].mxu0
  %v306 = vadd.f32 %v77, %v305
  %v307 = vpop.f32.mrb[0].mxu0
  %308 = vmatprep.mubr.f32.mxu0 0.0
  %309 = vmatmul.mubr.f32.gmra.mrb[0].mxu0 %v111
  %v310 = vpop.f32.mrb[0].mxu0
  %v311 = vadd.f32 %v77, %v310
  %v312 = vpop.f32.mrb[0].mxu0
  %313 = vmatprep.mubr.f32.mxu0 0.0
  %314 = vmatmul.mubr.f32.gmra.mrb[0].mxu0 %v114
  %v315 = vpop.f32.mrb[0].mxu0
  %v316 = vadd.f32 %v77, %v315
  %v317 = vpop.f32.mrb[0].mxu0
  %318 = vmatprep.mubr.f32.mxu0 0.0
  %319 = vmatmul.mubr.f32.gmra.mrb[0].mxu0 %v117
  %v320 = vpop.f32.mrb[0].mxu0
  %v321 = vadd.f32 %v77, %v320
  %v322 = vpop.f32.mrb[0].mxu0
  %323 = vmatprep.mubr.f32.mxu0 0.0
  %324 = vmatmul.mubr.f32.gmra.mrb[0].mxu0 %v120
  %v325 = vpop.f32.mrb[0].mxu0
  %v326 = vadd.f32 %v77, %v325
  %v327 = vpop.f32.mrb[0].mxu0
  %328 = vmatprep.mubr.f32.mxu0 0.0
  %329 = vmatmul.mubr.f32.gmra.mrb[0].mxu0 %v123
  %v330 = vpop.f32.mrb[0].mxu0
  %v331 = vadd.f32 %v77, %v330
  %v332 = vpop.f32.mrb[0].mxu0
  %333 = vmatprep.mubr.f32.mxu0 0.0
  %334 = vmatmul.mubr.f32.gmra.mrb[0].mxu0 %v126
  %v335 = vpop.f32.mrb[0].mxu0
  %v336 = vadd.f32 %v77, %v335
  %v337 = vpop.f32.mrb[0].mxu0
  %338 = vmatprep.mubr.f32.mxu0 0.0
  %339 = vmatmul.mubr.f32.gmra.mrb[0].mxu0 %v129
  %v340 = vpop.f32.mrb[0].mxu0
  %v341 = vadd.f32 %v77, %v340
  %v342 = vpop.f32.mrb[0].mxu0
  %343 = vmatprep.mubr.f32.mxu0 0.0
  %344 = vmatmul.mubr.f32.gmra.mrb[0].mxu0 %v132
  %v345 = vpop.f32.mrb[0].mxu0
  %v346 = vadd.f32 %v77, %v345
  %v347 = vpop.f32.mrb[0].mxu0
  %348 = vmatprep.mubr.f32.mxu0 0.0
  %349 = vmatmul.mubr.f32.gmra.mrb[0].mxu0 %v135
  %v350 = vpop.f32.mrb[0].mxu0
  %v351 = vadd.f32 %v77, %v350
  %v352 = vpop.f32.mrb[0].mxu0
  %353 = vmatprep.mubr.f32.mxu0 0.0
  %354 = vmatmul.mubr.f32.gmra.mrb[0].mxu0 %v138
  %v355 = vpop.f32.mrb[0].mxu0
  %v356 = vadd.f32 %v77, %v355
  %v357 = vpop.f32.mrb[0].mxu0
  %358 = vmatprep.mubr.f32.mxu0 0.0
  %359 = vmatmul.mubr.f32.gmra.mrb[0].mxu0 %v141
  %v360 = vpop.f32.mrb[0].mxu0
  %v361 = vadd.f32 %v77, %v360
  %v362 = vpop.f32.mrb[0].mxu0
  %363 = vmatprep.mubr.f32.mxu0 0.0
  %364 = vmatmul.mubr.f32.gmra.mrb[0].mxu0 %v144
  %v365 = vpop.f32.mrb[0].mxu0
  %v366 = vadd.f32 %v77, %v365
  %v367 = vpop.f32.mrb[0].mxu0
  %368 = vmatprep.mubr.f32.mxu0 0.0
  %369 = vmatmul.mubr.f32.gmra.mrb[0].mxu0 %v147
  %v370 = vpop.f32.mrb[0].mxu0
  %v371 = vadd.f32 %v77, %v370
  %v372 = vpop.f32.mrb[0].mxu0
  %373 = vmatprep.mubr.f32.mxu0 0.0
  %374 = vmatmul.mubr.f32.gmra.mrb[0].mxu0 %v150
  %v375 = vpop.f32.mrb[0].mxu0
  %v376 = vadd.f32 %v77, %v375
  %v377 = vpop.f32.mrb[0].mxu0
  %378 = vmatprep.mubr.f32.mxu0 0.0
  %379 = vmatmul.mubr.f32.gmra.mrb[0].mxu0 %v153
  %v380 = vpop.f32.mrb[0].mxu0
  %v381 = vadd.f32 %v77, %v380
  %v382 = vpop.f32.mrb[0].mxu0
  %383 = vmatprep.mubr.f32.mxu0 0.0
  %384 = vmatmul.mubr.f32.gmra.mrb[0].mxu0 %v156
  %v385 = vpop.f32.mrb[0].mxu0
  %v386 = vadd.f32 %v77, %v385
  %v387 = vpop.f32.mrb[0].mxu0
  %388 = vmatprep.mubr.f32.mxu0 0.0
  %389 = vmatmul.mubr.f32.gmra.mrb[0].mxu0 %v159
  %v390 = vpop.f32.mrb[0].mxu0
  %v391 = vadd.f32 %v77, %v390
  %v392 = vpop.f32.mrb[0].mxu0
  %393 = vmatprep.mubr.f32.mxu0 0.0
  %394 = vmatmul.mubr.f32.gmra.mrb[0].mxu0 %v162
  %v395 = vpop.f32.mrb[0].mxu0
  %v396 = vadd.f32 %v77, %v395
  %v397 = vpop.f32.mrb[0].mxu0
  %398 = vmatprep.mubr.f32.mxu0 0.0
  %399 = vmatmul.mubr.f32.gmra.mrb[0].mxu0 %v165
  %v400 = vpop.f32.mrb[0].mxu0
  %v401 = vadd.f32 %v77, %v400
  %v402 = vpop.f32.mrb[0].mxu0
  %403 = vmatprep.mubr.f32.mxu0 0.0
  %404 = vmatmul.mubr.f32.gmra.mrb[0].mxu0 %v168
  %v405 = vpop.f32.mrb[0].mxu0
  %v406 = vadd.f32 %v77, %v405
  %v407 = vpop.f32.mrb[0].mxu0
  %408 = vmatprep.mubr.f32.mxu0 0.0
  %409 = vmatmul.mubr.f32.gmra.mrb[0].mxu0 %v171
  %v410 = vpop.f32.mrb[0].mxu0
  %v411 = vadd.f32 %v77, %v410
  %v412 = vpop.f32.mrb[0].mxu0
  %413 = vmatprep.mubr.f32.mxu0 0.0
  %414 = vmatmul.mubr.f32.gmra.mrb[0].mxu0 %v174
  %v415 = vpop.f32.mrb[0].mxu0
  %v416 = vadd.f32 %v77, %v415
  %v417 = vpop.f32.mrb[0].mxu0
  %418 = vmatprep.mubr.f32.mxu0 0.0
  %419 = vmatmul.mubr.f32.gmra.mrb[0].mxu0 %v177
  %v420 = vpop.f32.mrb[0].mxu0
  %v421 = vadd.f32 %v77, %v420
  %v422 = vpop.f32.mrb[0].mxu0
  %423 = vmatprep.mubr.f32.mxu0 0.0
  %424 = vmatmul.mubr.f32.gmra.mrb[0].mxu0 %v180
  %v425 = vpop.f32.mrb[0].mxu0
  %v426 = vadd.f32 %v77, %v425
  %v427 = vpop.f32.mrb[0].mxu0
  %428 = vmatprep.mubr.f32.mxu0 0.0
  %429 = vmatmul.mubr.f32.gmra.mrb[0].mxu0 %v183
  %v430 = vpop.f32.mrb[0].mxu0
  %v431 = vadd.f32 %v77, %v430
  %v432 = vpop.f32.mrb[0].mxu0
  %433 = vmatprep.mubr.f32.mxu0 0.0
  %434 = vmatmul.mubr.f32.gmra.mrb[0].mxu0 %v186
  %v435 = vpop.f32.mrb[0].mxu0
  %v436 = vadd.f32 %v77, %v435
  %v437 = vpop.f32.mrb[0].mxu0
  %438 = vmatprep.mubr.f32.mxu0 0.0
  %439 = vmatmul.mubr.f32.gmra.mrb[0].mxu0 %v189
  %v440 = vpop.f32.mrb[0].mxu0
  %v441 = vadd.f32 %v77, %v440
  %v442 = vpop.f32.mrb[0].mxu0
  %443 = vmatprep.mubr.f32.mxu0 0.0
  %444 = vmatmul.mubr.f32.gmra.mrb[0].mxu0 %v192
  %v445 = vpop.f32.mrb[0].mxu0
  %v446 = vadd.f32 %v77, %v445
  %v447 = vpop.f32.mrb[0].mxu0
  %448 = vdwg.mxu0
  %v449 = vmax.f32 %v261, 0.0
  %v450 = vmax.f32 %v266, 0.0
  %v451 = vmax.f32 %v271, 0.0
  %v452 = vmax.f32 %v276, 0.0
  %v453 = vmax.f32 %v281, 0.0
  %v454 = vmax.f32 %v286, 0.0
  %v455 = vmax.f32 %v291, 0.0
  %v456 = vmax.f32 %v296, 0.0
  %v457 = vmax.f32 %v301, 0.0
  %v458 = vmax.f32 %v306, 0.0
  %v459 = vmax.f32 %v311, 0.0
  %v460 = vmax.f32 %v316, 0.0
  %v461 = vmax.f32 %v321, 0.0
  %v462 = vmax.f32 %v326, 0.0
  %v463 = vmax.f32 %v331, 0.0
  %v464 = vmax.f32 %v336, 0.0
  %v465 = vmax.f32 %v341, 0.0
  %v466 = vmax.f32 %v346, 0.0
  %v467 = vmax.f32 %v351, 0.0
  %v468 = vmax.f32 %v356, 0.0
  %v469 = vmax.f32 %v361, 0.0
  %v470 = vmax.f32 %v366, 0.0
  %v471 = vmax.f32 %v371, 0.0
  %v472 = vmax.f32 %v376, 0.0
  %v473 = vmax.f32 %v381, 0.0
  %v474 = vmax.f32 %v386, 0.0
  %v475 = vmax.f32 %v391, 0.0
  %v476 = vmax.f32 %v396, 0.0
  %v477 = vmax.f32 %v401, 0.0
  %v478 = vmax.f32 %v406, 0.0
  %v479 = vmax.f32 %v411, 0.0
  %v480 = vmax.f32 %v416, 0.0
  %v481 = vmax.f32 %v421, 0.0
  %v482 = vmax.f32 %v426, 0.0
  %v483 = vmax.f32 %v431, 0.0
  %v484 = vmax.f32 %v436, 0.0
  %v485 = vmax.f32 %v441, 0.0
  %v486 = vmax.f32 %v446, 0.0
  %v487 = vld [vmem:[%s3] sm:$0xff]
  %v488 = vld [vmem:[%s3 + $0x8] sm:$0xff]
  %v489 = vld [vmem:[%s3 + $0x10] sm:$0xff]
  %v490 = vld [vmem:[%s3 + $0x18] sm:$0xff]
  %v491 = vld [vmem:[%s3 + $0x20] sm:$0xff]
  %v492 = vld [vmem:[%s3 + $0x28] sm:$0xff]
  %v493 = vld [vmem:[%s3 + $0x30] sm:$0xff]
  %v494 = vld [vmem:[%s3 + $0x38] sm:$0xff]
  %v495 = vld [vmem:[%s3 + $0x40] sm:$0xff]
  %v496 = vld [vmem:[%s3 + $0x48] sm:$0xff]
  %v497 = vld [vmem:[%s3 + $0x50] sm:$0xff]
  %v498 = vld [vmem:[%s3 + $0x58] sm:$0xff]
  %v499 = vld [vmem:[%s3 + $0x60] sm:$0xff]
  %v500 = vld [vmem:[%s3 + $0x68] sm:$0xff]
  %v501 = vld [vmem:[%s3 + $0x70] sm:$0xff]
  %v502 = vld [vmem:[%s3 + $0x78] sm:$0xff]
  %v503 = vld [vmem:[%s4] sm:$0x1]
  %v505 = vlaneseq
  %v506 = vshrl.u32 %v505, 7
  %v507 = vsub.s32 0, %v506
  %v508 = vrot.slane %v503, %v507
  %510 = vmatprep.subr.mxu0 0.0
  %511 = vmatpush1.msra.mxu0 %v487
  %512 = vmatprep.subr.mxu0 0.0
  %513 = vmatpush1.msra.mxu0 %v488
  %514 = vmatprep.subr.mxu0 0.0
  %515 = vmatpush1.msra.mxu0 %v489
  %516 = vmatprep.subr.mxu0 0.0
  %517 = vmatpush1.msra.mxu0 %v490
  %518 = vmatprep.subr.mxu0 0.0
  %519 = vmatpush1.msra.mxu0 %v491
  %520 = vmatprep.subr.mxu0 0.0
  %521 = vmatpush1.msra.mxu0 %v492
  %522 = vmatprep.subr.mxu0 0.0
  %523 = vmatpush1.msra.mxu0 %v493
  %524 = vmatprep.subr.mxu0 0.0
  %525 = vmatpush1.msra.mxu0 %v494
  %526 = vmatprep.subr.mxu0 0.0
  %527 = vmatpush1.msra.mxu0 %v495
  %528 = vmatprep.subr.mxu0 0.0
  %529 = vmatpush1.msra.mxu0 %v496
  %530 = vmatprep.subr.mxu0 0.0
  %531 = vmatpush1.msra.mxu0 %v497
  %532 = vmatprep.subr.mxu0 0.0
  %533 = vmatpush1.msra.mxu0 %v498
  %534 = vmatprep.subr.mxu0 0.0
  %535 = vmatpush1.msra.mxu0 %v499
  %536 = vmatprep.subr.mxu0 0.0
  %537 = vmatpush1.msra.mxu0 %v500
  %538 = vmatprep.subr.mxu0 0.0
  %539 = vmatpush1.msra.mxu0 %v501
  %540 = vmatprep.subr.mxu0 0.0
  %541 = vmatpush1.msra.mxu0 %v502
  %542 = vmatprep.subr.mxu0 0.0
  %543 = vmatpush1.msra.mxu0 0.0
  %544 = vmatprep.subr.mxu0 0.0
  %545 = vmatpush1.msra.mxu0 0.0
  %546 = vmatprep.subr.mxu0 0.0
  %547 = vmatpush1.msra.mxu0 0.0
  %548 = vmatprep.subr.mxu0 0.0
  %549 = vmatpush1.msra.mxu0 0.0
  %550 = vmatprep.subr.mxu0 0.0
  %551 = vmatpush1.msra.mxu0 0.0
  %552 = vmatprep.subr.mxu0 0.0
  %553 = vmatpush1.msra.mxu0 0.0
  %554 = vmatprep.subr.mxu0 0.0
  %555 = vmatpush1.msra.mxu0 0.0
  %556 = vmatprep.subr.mxu0 0.0
  %557 = vmatpush1.msra.mxu0 0.0
  %558 = vmatprep.subr.mxu0 0.0
  %559 = vmatpush1.msra.mxu0 0.0
  %560 = vmatprep.subr.mxu0 0.0
  %561 = vmatpush1.msra.mxu0 0.0
  %562 = vmatprep.subr.mxu0 0.0
  %563 = vmatpush1.msra.mxu0 0.0
  %564 = vmatprep.subr.mxu0 0.0
  %565 = vmatpush1.msra.mxu0 0.0
  %566 = vmatprep.subr.mxu0 0.0
  %567 = vmatpush1.msra.mxu0 0.0
  %568 = vmatprep.subr.mxu0 0.0
  %569 = vmatpush1.msra.mxu0 0.0
  %570 = vmatprep.subr.mxu0 0.0
  %571 = vmatpush1.msra.mxu0 0.0
  %572 = vmatprep.subr.mxu0 0.0
  %573 = vmatpush1.msra.mxu0 0.0
  %574 = vmatprep.mubr.f32.mxu0 0.0
  %575 = vmatmul.mubr.f32.gmra.mrb[0].mxu0 %v449
  %v576 = vpop.f32.mrb[0].mxu0
  %v577 = vadd.f32 %v508, %v576
  %v578 = vpop.f32.mrb[0].mxu0
  %579 = vmatprep.mubr.f32.mxu0 0.0
  %580 = vmatmul.mubr.f32.gmra.mrb[0].mxu0 %v450
  %v581 = vpop.f32.mrb[0].mxu0
  %v582 = vadd.f32 %v508, %v581
  %v583 = vpop.f32.mrb[0].mxu0
  %584 = vmatprep.mubr.f32.mxu0 0.0
  %585 = vmatmul.mubr.f32.gmra.mrb[0].mxu0 %v451
  %v586 = vpop.f32.mrb[0].mxu0
  %v587 = vadd.f32 %v508, %v586
  %v588 = vpop.f32.mrb[0].mxu0
  %589 = vmatprep.mubr.f32.mxu0 0.0
  %590 = vmatmul.mubr.f32.gmra.mrb[0].mxu0 %v452
  %v591 = vpop.f32.mrb[0].mxu0
  %v592 = vadd.f32 %v508, %v591
  %v593 = vpop.f32.mrb[0].mxu0
  %594 = vmatprep.mubr.f32.mxu0 0.0
  %595 = vmatmul.mubr.f32.gmra.mrb[0].mxu0 %v453
  %v596 = vpop.f32.mrb[0].mxu0
  %v597 = vadd.f32 %v508, %v596
  %v598 = vpop.f32.mrb[0].mxu0
  %599 = vmatprep.mubr.f32.mxu0 0.0
  %600 = vmatmul.mubr.f32.gmra.mrb[0].mxu0 %v454
  %v601 = vpop.f32.mrb[0].mxu0
  %v602 = vadd.f32 %v508, %v601
  %v603 = vpop.f32.mrb[0].mxu0
  %604 = vmatprep.mubr.f32.mxu0 0.0
  %605 = vmatmul.mubr.f32.gmra.mrb[0].mxu0 %v455
  %v606 = vpop.f32.mrb[0].mxu0
  %v607 = vadd.f32 %v508, %v606
  %v608 = vpop.f32.mrb[0].mxu0
  %609 = vmatprep.mubr.f32.mxu0 0.0
  %610 = vmatmul.mubr.f32.gmra.mrb[0].mxu0 %v456
  %v611 = vpop.f32.mrb[0].mxu0
  %v612 = vadd.f32 %v508, %v611
  %v613 = vpop.f32.mrb[0].mxu0
  %614 = vmatprep.mubr.f32.mxu0 0.0
  %615 = vmatmul.mubr.f32.gmra.mrb[0].mxu0 %v457
  %v616 = vpop.f32.mrb[0].mxu0
  %v617 = vadd.f32 %v508, %v616
  %v618 = vpop.f32.mrb[0].mxu0
  %619 = vmatprep.mubr.f32.mxu0 0.0
  %620 = vmatmul.mubr.f32.gmra.mrb[0].mxu0 %v458
  %v621 = vpop.f32.mrb[0].mxu0
  %v622 = vadd.f32 %v508, %v621
  %v623 = vpop.f32.mrb[0].mxu0
  %624 = vmatprep.mubr.f32.mxu0 0.0
  %625 = vmatmul.mubr.f32.gmra.mrb[0].mxu0 %v459
  %v626 = vpop.f32.mrb[0].mxu0
  %v627 = vadd.f32 %v508, %v626
  %v628 = vpop.f32.mrb[0].mxu0
  %629 = vmatprep.mubr.f32.mxu0 0.0
  %630 = vmatmul.mubr.f32.gmra.mrb[0].mxu0 %v460
  %v631 = vpop.f32.mrb[0].mxu0
  %v632 = vadd.f32 %v508, %v631
  %v633 = vpop.f32.mrb[0].mxu0
  %634 = vmatprep.mubr.f32.mxu0 0.0
  %635 = vmatmul.mubr.f32.gmra.mrb[0].mxu0 %v461
  %v636 = vpop.f32.mrb[0].mxu0
  %v637 = vadd.f32 %v508, %v636
  %v638 = vpop.f32.mrb[0].mxu0
  %639 = vmatprep.mubr.f32.mxu0 0.0
  %640 = vmatmul.mubr.f32.gmra.mrb[0].mxu0 %v462
  %v641 = vpop.f32.mrb[0].mxu0
  %v642 = vadd.f32 %v508, %v641
  %v643 = vpop.f32.mrb[0].mxu0
  %644 = vmatprep.mubr.f32.mxu0 0.0
  %645 = vmatmul.mubr.f32.gmra.mrb[0].mxu0 %v463
  %v646 = vpop.f32.mrb[0].mxu0
  %v647 = vadd.f32 %v508, %v646
  %v648 = vpop.f32.mrb[0].mxu0
  %649 = vmatprep.mubr.f32.mxu0 0.0
  %650 = vmatmul.mubr.f32.gmra.mrb[0].mxu0 %v464
  %v651 = vpop.f32.mrb[0].mxu0
  %v652 = vadd.f32 %v508, %v651
  %v653 = vpop.f32.mrb[0].mxu0
  %654 = vmatprep.mubr.f32.mxu0 0.0
  %655 = vmatmul.mubr.f32.gmra.mrb[0].mxu0 %v465
  %v656 = vpop.f32.mrb[0].mxu0
  %v657 = vadd.f32 %v508, %v656
  %v658 = vpop.f32.mrb[0].mxu0
  %659 = vmatprep.mubr.f32.mxu0 0.0
  %660 = vmatmul.mubr.f32.gmra.mrb[0].mxu0 %v466
  %v661 = vpop.f32.mrb[0].mxu0
  %v662 = vadd.f32 %v508, %v661
  %v663 = vpop.f32.mrb[0].mxu0
  %664 = vmatprep.mubr.f32.mxu0 0.0
  %665 = vmatmul.mubr.f32.gmra.mrb[0].mxu0 %v467
  %v666 = vpop.f32.mrb[0].mxu0
  %v667 = vadd.f32 %v508, %v666
  %v668 = vpop.f32.mrb[0].mxu0
  %669 = vmatprep.mubr.f32.mxu0 0.0
  %670 = vmatmul.mubr.f32.gmra.mrb[0].mxu0 %v468
  %v671 = vpop.f32.mrb[0].mxu0
  %v672 = vadd.f32 %v508, %v671
  %v673 = vpop.f32.mrb[0].mxu0
  %674 = vmatprep.mubr.f32.mxu0 0.0
  %675 = vmatmul.mubr.f32.gmra.mrb[0].mxu0 %v469
  %v676 = vpop.f32.mrb[0].mxu0
  %v677 = vadd.f32 %v508, %v676
  %v678 = vpop.f32.mrb[0].mxu0
  %679 = vmatprep.mubr.f32.mxu0 0.0
  %680 = vmatmul.mubr.f32.gmra.mrb[0].mxu0 %v470
  %v681 = vpop.f32.mrb[0].mxu0
  %v682 = vadd.f32 %v508, %v681
  %v683 = vpop.f32.mrb[0].mxu0
  %684 = vmatprep.mubr.f32.mxu0 0.0
  %685 = vmatmul.mubr.f32.gmra.mrb[0].mxu0 %v471
  %v686 = vpop.f32.mrb[0].mxu0
  %v687 = vadd.f32 %v508, %v686
  %v688 = vpop.f32.mrb[0].mxu0
  %689 = vmatprep.mubr.f32.mxu0 0.0
  %690 = vmatmul.mubr.f32.gmra.mrb[0].mxu0 %v472
  %v691 = vpop.f32.mrb[0].mxu0
  %v692 = vadd.f32 %v508, %v691
  %v693 = vpop.f32.mrb[0].mxu0
  %694 = vmatprep.mubr.f32.mxu0 0.0
  %695 = vmatmul.mubr.f32.gmra.mrb[0].mxu0 %v473
  %v696 = vpop.f32.mrb[0].mxu0
  %v697 = vadd.f32 %v508, %v696
  %v698 = vpop.f32.mrb[0].mxu0
  %699 = vmatprep.mubr.f32.mxu0 0.0
  %700 = vmatmul.mubr.f32.gmra.mrb[0].mxu0 %v474
  %v701 = vpop.f32.mrb[0].mxu0
  %v702 = vadd.f32 %v508, %v701
  %v703 = vpop.f32.mrb[0].mxu0
  %704 = vmatprep.mubr.f32.mxu0 0.0
  %705 = vmatmul.mubr.f32.gmra.mrb[0].mxu0 %v475
  %v706 = vpop.f32.mrb[0].mxu0
  %v707 = vadd.f32 %v508, %v706
  %v708 = vpop.f32.mrb[0].mxu0
  %709 = vmatprep.mubr.f32.mxu0 0.0
  %710 = vmatmul.mubr.f32.gmra.mrb[0].mxu0 %v476
  %v711 = vpop.f32.mrb[0].mxu0
  %v712 = vadd.f32 %v508, %v711
  %v713 = vpop.f32.mrb[0].mxu0
  %714 = vmatprep.mubr.f32.mxu0 0.0
  %715 = vmatmul.mubr.f32.gmra.mrb[0].mxu0 %v477
  %v716 = vpop.f32.mrb[0].mxu0
  %v717 = vadd.f32 %v508, %v716
  %v718 = vpop.f32.mrb[0].mxu0
  %719 = vmatprep.mubr.f32.mxu0 0.0
  %720 = vmatmul.mubr.f32.gmra.mrb[0].mxu0 %v478
  %v721 = vpop.f32.mrb[0].mxu0
  %v722 = vadd.f32 %v508, %v721
  %v723 = vpop.f32.mrb[0].mxu0
  %724 = vmatprep.mubr.f32.mxu0 0.0
  %725 = vmatmul.mubr.f32.gmra.mrb[0].mxu0 %v479
  %v726 = vpop.f32.mrb[0].mxu0
  %v727 = vadd.f32 %v508, %v726
  %v728 = vpop.f32.mrb[0].mxu0
  %729 = vmatprep.mubr.f32.mxu0 0.0
  %730 = vmatmul.mubr.f32.gmra.mrb[0].mxu0 %v480
  %v731 = vpop.f32.mrb[0].mxu0
  %v732 = vadd.f32 %v508, %v731
  %v733 = vpop.f32.mrb[0].mxu0
  %734 = vmatprep.mubr.f32.mxu0 0.0
  %735 = vmatmul.mubr.f32.gmra.mrb[0].mxu0 %v481
  %v736 = vpop.f32.mrb[0].mxu0
  %v737 = vadd.f32 %v508, %v736
  %v738 = vpop.f32.mrb[0].mxu0
  %739 = vmatprep.mubr.f32.mxu0 0.0
  %740 = vmatmul.mubr.f32.gmra.mrb[0].mxu0 %v482
  %v741 = vpop.f32.mrb[0].mxu0
  %v742 = vadd.f32 %v508, %v741
  %v743 = vpop.f32.mrb[0].mxu0
  %744 = vmatprep.mubr.f32.mxu0 0.0
  %745 = vmatmul.mubr.f32.gmra.mrb[0].mxu0 %v483
  %v746 = vpop.f32.mrb[0].mxu0
  %v747 = vadd.f32 %v508, %v746
  %v748 = vpop.f32.mrb[0].mxu0
  %749 = vmatprep.mubr.f32.mxu0 0.0
  %750 = vmatmul.mubr.f32.gmra.mrb[0].mxu0 %v484
  %v751 = vpop.f32.mrb[0].mxu0
  %v752 = vadd.f32 %v508, %v751
  %v753 = vpop.f32.mrb[0].mxu0
  %754 = vmatprep.mubr.f32.mxu0 0.0
  %755 = vmatmul.mubr.f32.gmra.mrb[0].mxu0 %v485
  %v756 = vpop.f32.mrb[0].mxu0
  %v757 = vadd.f32 %v508, %v756
  %v758 = vpop.f32.mrb[0].mxu0
  %759 = vmatprep.mubr.f32.mxu0 0.0
  %760 = vmatmul.mubr.f32.gmra.mrb[0].mxu0 %v486
  %v761 = vpop.f32.mrb[0].mxu0
  %v762 = vadd.f32 %v508, %v761
  %v763 = vpop.f32.mrb[0].mxu0
  %764 = vdwg.mxu0
  %v765 = vmax.f32 %v577, 0.0
  %v766 = vmax.f32 %v582, 0.0
  %v767 = vmax.f32 %v587, 0.0
  %v768 = vmax.f32 %v592, 0.0
  %v769 = vmax.f32 %v597, 0.0
  %v770 = vmax.f32 %v602, 0.0
  %v771 = vmax.f32 %v607, 0.0
  %v772 = vmax.f32 %v612, 0.0
  %v773 = vmax.f32 %v617, 0.0
  %v774 = vmax.f32 %v622, 0.0
  %v775 = vmax.f32 %v627, 0.0
  %v776 = vmax.f32 %v632, 0.0
  %v777 = vmax.f32 %v637, 0.0
  %v778 = vmax.f32 %v642, 0.0
  %v779 = vmax.f32 %v647, 0.0
  %v780 = vmax.f32 %v652, 0.0
  %v781 = vmax.f32 %v657, 0.0
  %v782 = vmax.f32 %v662, 0.0
  %v783 = vmax.f32 %v667, 0.0
  %v784 = vmax.f32 %v672, 0.0
  %v785 = vmax.f32 %v677, 0.0
  %v786 = vmax.f32 %v682, 0.0
  %v787 = vmax.f32 %v687, 0.0
  %v788 = vmax.f32 %v692, 0.0
  %v789 = vmax.f32 %v697, 0.0
  %v790 = vmax.f32 %v702, 0.0
  %v791 = vmax.f32 %v707, 0.0
  %v792 = vmax.f32 %v712, 0.0
  %v793 = vmax.f32 %v717, 0.0
  %v794 = vmax.f32 %v722, 0.0
  %v795 = vmax.f32 %v727, 0.0
  %v796 = vmax.f32 %v732, 0.0
  %v797 = vmax.f32 %v737, 0.0
  %v798 = vmax.f32 %v742, 0.0
  %v799 = vmax.f32 %v747, 0.0
  %v800 = vmax.f32 %v752, 0.0
  %v801 = vmax.f32 %v757, 0.0
  %v802 = vmax.f32 %v762, 0.0
  %v803 = vld [vmem:[%s5] sm:$0xff]
  %v804 = vld [vmem:[%s5 + $0x8] sm:$0xff]
  %v805 = vld [vmem:[%s5 + $0x10] sm:$0xff]
  %v806 = vld [vmem:[%s5 + $0x18] sm:$0xff]
  %v807 = vld [vmem:[%s5 + $0x20] sm:$0xff]
  %v808 = vld [vmem:[%s5 + $0x28] sm:$0xff]
  %v809 = vld [vmem:[%s5 + $0x30] sm:$0xff]
  %v810 = vld [vmem:[%s5 + $0x38] sm:$0xff]
  %v811 = vld [vmem:[%s5 + $0x40] sm:$0xff]
  %v812 = vld [vmem:[%s5 + $0x48] sm:$0xff]
  %v813 = vld [vmem:[%s5 + $0x50] sm:$0xff]
  %v814 = vld [vmem:[%s5 + $0x58] sm:$0xff]
  %v815 = vld [vmem:[%s5 + $0x60] sm:$0xff]
  %v816 = vld [vmem:[%s5 + $0x68] sm:$0xff]
  %v817 = vld [vmem:[%s5 + $0x70] sm:$0xff]
  %v818 = vld [vmem:[%s5 + $0x78] sm:$0xff]
  %v819 = vld [vmem:[%s6] sm:$0x1]
  %v821 = vlaneseq
  %v822 = vshrl.u32 %v821, 7
  %v823 = vsub.s32 0, %v822
  %v824 = vrot.slane %v819, %v823
  %826 = vmatprep.subr.mxu0 0.0
  %827 = vmatpush1.msra.mxu0 %v803
  %828 = vmatprep.subr.mxu0 0.0
  %829 = vmatpush1.msra.mxu0 %v804
  %830 = vmatprep.subr.mxu0 0.0
  %831 = vmatpush1.msra.mxu0 %v805
  %832 = vmatprep.subr.mxu0 0.0
  %833 = vmatpush1.msra.mxu0 %v806
  %834 = vmatprep.subr.mxu0 0.0
  %835 = vmatpush1.msra.mxu0 %v807
  %836 = vmatprep.subr.mxu0 0.0
  %837 = vmatpush1.msra.mxu0 %v808
  %838 = vmatprep.subr.mxu0 0.0
  %839 = vmatpush1.msra.mxu0 %v809
  %840 = vmatprep.subr.mxu0 0.0
  %841 = vmatpush1.msra.mxu0 %v810
  %842 = vmatprep.subr.mxu0 0.0
  %843 = vmatpush1.msra.mxu0 %v811
  %844 = vmatprep.subr.mxu0 0.0
  %845 = vmatpush1.msra.mxu0 %v812
  %846 = vmatprep.subr.mxu0 0.0
  %847 = vmatpush1.msra.mxu0 %v813
  %848 = vmatprep.subr.mxu0 0.0
  %849 = vmatpush1.msra.mxu0 %v814
  %850 = vmatprep.subr.mxu0 0.0
  %851 = vmatpush1.msra.mxu0 %v815
  %852 = vmatprep.subr.mxu0 0.0
  %853 = vmatpush1.msra.mxu0 %v816
  %854 = vmatprep.subr.mxu0 0.0
  %855 = vmatpush1.msra.mxu0 %v817
  %856 = vmatprep.subr.mxu0 0.0
  %857 = vmatpush1.msra.mxu0 %v818
  %858 = vmatprep.subr.mxu0 0.0
  %859 = vmatpush1.msra.mxu0 0.0
  %860 = vmatprep.subr.mxu0 0.0
  %861 = vmatpush1.msra.mxu0 0.0
  %862 = vmatprep.subr.mxu0 0.0
  %863 = vmatpush1.msra.mxu0 0.0
  %864 = vmatprep.subr.mxu0 0.0
  %865 = vmatpush1.msra.mxu0 0.0
  %866 = vmatprep.subr.mxu0 0.0
  %867 = vmatpush1.msra.mxu0 0.0
  %868 = vmatprep.subr.mxu0 0.0
  %869 = vmatpush1.msra.mxu0 0.0
  %870 = vmatprep.subr.mxu0 0.0
  %871 = vmatpush1.msra.mxu0 0.0
  %872 = vmatprep.subr.mxu0 0.0
  %873 = vmatpush1.msra.mxu0 0.0
  %874 = vmatprep.subr.mxu0 0.0
  %875 = vmatpush1.msra.mxu0 0.0
  %876 = vmatprep.subr.mxu0 0.0
  %877 = vmatpush1.msra.mxu0 0.0
  %878 = vmatprep.subr.mxu0 0.0
  %879 = vmatpush1.msra.mxu0 0.0
  %880 = vmatprep.subr.mxu0 0.0
  %881 = vmatpush1.msra.mxu0 0.0
  %882 = vmatprep.subr.mxu0 0.0
  %883 = vmatpush1.msra.mxu0 0.0
  %884 = vmatprep.subr.mxu0 0.0
  %885 = vmatpush1.msra.mxu0 0.0
  %886 = vmatprep.subr.mxu0 0.0
  %887 = vmatpush1.msra.mxu0 0.0
  %888 = vmatprep.subr.mxu0 0.0
  %889 = vmatpush1.msra.mxu0 0.0
  %890 = vmatprep.mubr.f32.mxu0 0.0
  %891 = vmatmul.mubr.f32.gmra.mrb[0].mxu0 %v765
  %v892 = vpop.f32.mrb[0].mxu0
  %v893 = vadd.f32 %v824, %v892
  %v894 = vpop.f32.mrb[0].mxu0
  %895 = vmatprep.mubr.f32.mxu0 0.0
  %896 = vmatmul.mubr.f32.gmra.mrb[0].mxu0 %v766
  %v897 = vpop.f32.mrb[0].mxu0
  %v898 = vadd.f32 %v824, %v897
  %v899 = vpop.f32.mrb[0].mxu0
  %900 = vmatprep.mubr.f32.mxu0 0.0
  %901 = vmatmul.mubr.f32.gmra.mrb[0].mxu0 %v767
  %v902 = vpop.f32.mrb[0].mxu0
  %v903 = vadd.f32 %v824, %v902
  %v904 = vpop.f32.mrb[0].mxu0
  %905 = vmatprep.mubr.f32.mxu0 0.0
  %906 = vmatmul.mubr.f32.gmra.mrb[0].mxu0 %v768
  %v907 = vpop.f32.mrb[0].mxu0
  %v908 = vadd.f32 %v824, %v907
  %v909 = vpop.f32.mrb[0].mxu0
  %910 = vmatprep.mubr.f32.mxu0 0.0
  %911 = vmatmul.mubr.f32.gmra.mrb[0].mxu0 %v769
  %v912 = vpop.f32.mrb[0].mxu0
  %v913 = vadd.f32 %v824, %v912
  %v914 = vpop.f32.mrb[0].mxu0
  %915 = vmatprep.mubr.f32.mxu0 0.0
  %916 = vmatmul.mubr.f32.gmra.mrb[0].mxu0 %v770
  %v917 = vpop.f32.mrb[0].mxu0
  %v918 = vadd.f32 %v824, %v917
  %v919 = vpop.f32.mrb[0].mxu0
  %920 = vmatprep.mubr.f32.mxu0 0.0
  %921 = vmatmul.mubr.f32.gmra.mrb[0].mxu0 %v771
  %v922 = vpop.f32.mrb[0].mxu0
  %v923 = vadd.f32 %v824, %v922
  %v924 = vpop.f32.mrb[0].mxu0
  %925 = vmatprep.mubr.f32.mxu0 0.0
  %926 = vmatmul.mubr.f32.gmra.mrb[0].mxu0 %v772
  %v927 = vpop.f32.mrb[0].mxu0
  %v928 = vadd.f32 %v824, %v927
  %v929 = vpop.f32.mrb[0].mxu0
  %930 = vmatprep.mubr.f32.mxu0 0.0
  %931 = vmatmul.mubr.f32.gmra.mrb[0].mxu0 %v773
  %v932 = vpop.f32.mrb[0].mxu0
  %v933 = vadd.f32 %v824, %v932
  %v934 = vpop.f32.mrb[0].mxu0
  %935 = vmatprep.mubr.f32.mxu0 0.0
  %936 = vmatmul.mubr.f32.gmra.mrb[0].mxu0 %v774
  %v937 = vpop.f32.mrb[0].mxu0
  %v938 = vadd.f32 %v824, %v937
  %v939 = vpop.f32.mrb[0].mxu0
  %940 = vmatprep.mubr.f32.mxu0 0.0
  %941 = vmatmul.mubr.f32.gmra.mrb[0].mxu0 %v775
  %v942 = vpop.f32.mrb[0].mxu0
  %v943 = vadd.f32 %v824, %v942
  %v944 = vpop.f32.mrb[0].mxu0
  %945 = vmatprep.mubr.f32.mxu0 0.0
  %946 = vmatmul.mubr.f32.gmra.mrb[0].mxu0 %v776
  %v947 = vpop.f32.mrb[0].mxu0
  %v948 = vadd.f32 %v824, %v947
  %v949 = vpop.f32.mrb[0].mxu0
  %950 = vmatprep.mubr.f32.mxu0 0.0
  %951 = vmatmul.mubr.f32.gmra.mrb[0].mxu0 %v777
  %v952 = vpop.f32.mrb[0].mxu0
  %v953 = vadd.f32 %v824, %v952
  %v954 = vpop.f32.mrb[0].mxu0
  %955 = vmatprep.mubr.f32.mxu0 0.0
  %956 = vmatmul.mubr.f32.gmra.mrb[0].mxu0 %v778
  %v957 = vpop.f32.mrb[0].mxu0
  %v958 = vadd.f32 %v824, %v957
  %v959 = vpop.f32.mrb[0].mxu0
  %960 = vmatprep.mubr.f32.mxu0 0.0
  %961 = vmatmul.mubr.f32.gmra.mrb[0].mxu0 %v779
  %v962 = vpop.f32.mrb[0].mxu0
  %v963 = vadd.f32 %v824, %v962
  %v964 = vpop.f32.mrb[0].mxu0
  %965 = vmatprep.mubr.f32.mxu0 0.0
  %966 = vmatmul.mubr.f32.gmra.mrb[0].mxu0 %v780
  %v967 = vpop.f32.mrb[0].mxu0
  %v968 = vadd.f32 %v824, %v967
  %v969 = vpop.f32.mrb[0].mxu0
  %970 = vmatprep.mubr.f32.mxu0 0.0
  %971 = vmatmul.mubr.f32.gmra.mrb[0].mxu0 %v781
  %v972 = vpop.f32.mrb[0].mxu0
  %v973 = vadd.f32 %v824, %v972
  %v974 = vpop.f32.mrb[0].mxu0
  %975 = vmatprep.mubr.f32.mxu0 0.0
  %976 = vmatmul.mubr.f32.gmra.mrb[0].mxu0 %v782
  %v977 = vpop.f32.mrb[0].mxu0
  %v978 = vadd.f32 %v824, %v977
  %v979 = vpop.f32.mrb[0].mxu0
  %980 = vmatprep.mubr.f32.mxu0 0.0
  %981 = vmatmul.mubr.f32.gmra.mrb[0].mxu0 %v783
  %v982 = vpop.f32.mrb[0].mxu0
  %v983 = vadd.f32 %v824, %v982
  %v984 = vpop.f32.mrb[0].mxu0
  %985 = vmatprep.mubr.f32.mxu0 0.0
  %986 = vmatmul.mubr.f32.gmra.mrb[0].mxu0 %v784
  %v987 = vpop.f32.mrb[0].mxu0
  %v988 = vadd.f32 %v824, %v987
  %v989 = vpop.f32.mrb[0].mxu0
  %990 = vmatprep.mubr.f32.mxu0 0.0
  %991 = vmatmul.mubr.f32.gmra.mrb[0].mxu0 %v785
  %v992 = vpop.f32.mrb[0].mxu0
  %v993 = vadd.f32 %v824, %v992
  %v994 = vpop.f32.mrb[0].mxu0
  %995 = vmatprep.mubr.f32.mxu0 0.0
  %996 = vmatmul.mubr.f32.gmra.mrb[0].mxu0 %v786
  %v997 = vpop.f32.mrb[0].mxu0
  %v998 = vadd.f32 %v824, %v997
  %v999 = vpop.f32.mrb[0].mxu0
  %1000 = vmatprep.mubr.f32.mxu0 0.0
  %1001 = vmatmul.mubr.f32.gmra.mrb[0].mxu0 %v787
  %v1002 = vpop.f32.mrb[0].mxu0
  %v1003 = vadd.f32 %v824, %v1002
  %v1004 = vpop.f32.mrb[0].mxu0
  %1005 = vmatprep.mubr.f32.mxu0 0.0
  %1006 = vmatmul.mubr.f32.gmra.mrb[0].mxu0 %v788
  %v1007 = vpop.f32.mrb[0].mxu0
  %v1008 = vadd.f32 %v824, %v1007
  %v1009 = vpop.f32.mrb[0].mxu0
  %1010 = vmatprep.mubr.f32.mxu0 0.0
  %1011 = vmatmul.mubr.f32.gmra.mrb[0].mxu0 %v789
  %v1012 = vpop.f32.mrb[0].mxu0
  %v1013 = vadd.f32 %v824, %v1012
  %v1014 = vpop.f32.mrb[0].mxu0
  %1015 = vmatprep.mubr.f32.mxu0 0.0
  %1016 = vmatmul.mubr.f32.gmra.mrb[0].mxu0 %v790
  %v1017 = vpop.f32.mrb[0].mxu0
  %v1018 = vadd.f32 %v824, %v1017
  %v1019 = vpop.f32.mrb[0].mxu0
  %1020 = vmatprep.mubr.f32.mxu0 0.0
  %1021 = vmatmul.mubr.f32.gmra.mrb[0].mxu0 %v791
  %v1022 = vpop.f32.mrb[0].mxu0
  %v1023 = vadd.f32 %v824, %v1022
  %v1024 = vpop.f32.mrb[0].mxu0
  %1025 = vmatprep.mubr.f32.mxu0 0.0
  %1026 = vmatmul.mubr.f32.gmra.mrb[0].mxu0 %v792
  %v1027 = vpop.f32.mrb[0].mxu0
  %v1028 = vadd.f32 %v824, %v1027
  %v1029 = vpop.f32.mrb[0].mxu0
  %1030 = vmatprep.mubr.f32.mxu0 0.0
  %1031 = vmatmul.mubr.f32.gmra.mrb[0].mxu0 %v793
  %v1032 = vpop.f32.mrb[0].mxu0
  %v1033 = vadd.f32 %v824, %v1032
  %v1034 = vpop.f32.mrb[0].mxu0
  %1035 = vmatprep.mubr.f32.mxu0 0.0
  %1036 = vmatmul.mubr.f32.gmra.mrb[0].mxu0 %v794
  %v1037 = vpop.f32.mrb[0].mxu0
  %v1038 = vadd.f32 %v824, %v1037
  %v1039 = vpop.f32.mrb[0].mxu0
  %1040 = vmatprep.mubr.f32.mxu0 0.0
  %1041 = vmatmul.mubr.f32.gmra.mrb[0].mxu0 %v795
  %v1042 = vpop.f32.mrb[0].mxu0
  %v1043 = vadd.f32 %v824, %v1042
  %v1044 = vpop.f32.mrb[0].mxu0
  %1045 = vmatprep.mubr.f32.mxu0 0.0
  %1046 = vmatmul.mubr.f32.gmra.mrb[0].mxu0 %v796
  %v1047 = vpop.f32.mrb[0].mxu0
  %v1048 = vadd.f32 %v824, %v1047
  %v1049 = vpop.f32.mrb[0].mxu0
  %1050 = vmatprep.mubr.f32.mxu0 0.0
  %1051 = vmatmul.mubr.f32.gmra.mrb[0].mxu0 %v797
  %v1052 = vpop.f32.mrb[0].mxu0
  %v1053 = vadd.f32 %v824, %v1052
  %v1054 = vpop.f32.mrb[0].mxu0
  %1055 = vmatprep.mubr.f32.mxu0 0.0
  %1056 = vmatmul.mubr.f32.gmra.mrb[0].mxu0 %v798
  %v1057 = vpop.f32.mrb[0].mxu0
  %v1058 = vadd.f32 %v824, %v1057
  %v1059 = vpop.f32.mrb[0].mxu0
  %1060 = vmatprep.mubr.f32.mxu0 0.0
  %1061 = vmatmul.mubr.f32.gmra.mrb[0].mxu0 %v799
  %v1062 = vpop.f32.mrb[0].mxu0
  %v1063 = vadd.f32 %v824, %v1062
  %v1064 = vpop.f32.mrb[0].mxu0
  %1065 = vmatprep.mubr.f32.mxu0 0.0
  %1066 = vmatmul.mubr.f32.gmra.mrb[0].mxu0 %v800
  %v1067 = vpop.f32.mrb[0].mxu0
  %v1068 = vadd.f32 %v824, %v1067
  %v1069 = vpop.f32.mrb[0].mxu0
  %1070 = vmatprep.mubr.f32.mxu0 0.0
  %1071 = vmatmul.mubr.f32.gmra.mrb[0].mxu0 %v801
  %v1072 = vpop.f32.mrb[0].mxu0
  %v1073 = vadd.f32 %v824, %v1072
  %v1074 = vpop.f32.mrb[0].mxu0
  %1075 = vmatprep.mubr.f32.mxu0 0.0
  %1076 = vmatmul.mubr.f32.gmra.mrb[0].mxu0 %v802
  %v1077 = vpop.f32.mrb[0].mxu0
  %v1078 = vadd.f32 %v824, %v1077
  %v1079 = vpop.f32.mrb[0].mxu0
  %1080 = vdwg.mxu0
  %v1081 = vmax.f32 %v893, 0.0
  %v1082 = vmax.f32 %v898, 0.0
  %v1083 = vmax.f32 %v903, 0.0
  %v1084 = vmax.f32 %v908, 0.0
  %v1085 = vmax.f32 %v913, 0.0
  %v1086 = vmax.f32 %v918, 0.0
  %v1087 = vmax.f32 %v923, 0.0
  %v1088 = vmax.f32 %v928, 0.0
  %v1089 = vmax.f32 %v933, 0.0
  %v1090 = vmax.f32 %v938, 0.0
  %v1091 = vmax.f32 %v943, 0.0
  %v1092 = vmax.f32 %v948, 0.0
  %v1093 = vmax.f32 %v953, 0.0
  %v1094 = vmax.f32 %v958, 0.0
  %v1095 = vmax.f32 %v963, 0.0
  %v1096 = vmax.f32 %v968, 0.0
  %v1097 = vmax.f32 %v973, 0.0
  %v1098 = vmax.f32 %v978, 0.0
  %v1099 = vmax.f32 %v983, 0.0
  %v1100 = vmax.f32 %v988, 0.0
  %v1101 = vmax.f32 %v993, 0.0
  %v1102 = vmax.f32 %v998, 0.0
  %v1103 = vmax.f32 %v1003, 0.0
  %v1104 = vmax.f32 %v1008, 0.0
  %v1105 = vmax.f32 %v1013, 0.0
  %v1106 = vmax.f32 %v1018, 0.0
  %v1107 = vmax.f32 %v1023, 0.0
  %v1108 = vmax.f32 %v1028, 0.0
  %v1109 = vmax.f32 %v1033, 0.0
  %v1110 = vmax.f32 %v1038, 0.0
  %v1111 = vmax.f32 %v1043, 0.0
  %v1112 = vmax.f32 %v1048, 0.0
  %v1113 = vmax.f32 %v1053, 0.0
  %v1114 = vmax.f32 %v1058, 0.0
  %v1115 = vmax.f32 %v1063, 0.0
  %v1116 = vmax.f32 %v1068, 0.0
  %v1117 = vmax.f32 %v1073, 0.0
  %v1118 = vmax.f32 %v1078, 0.0
  %v1119 = vld [vmem:[%s7] sm:$0xff]
  %v1120 = vld [vmem:[%s7 + $0x8] sm:$0xff]
  %v1121 = vld [vmem:[%s7 + $0x10] sm:$0xff]
  %v1122 = vld [vmem:[%s7 + $0x18] sm:$0xff]
  %v1123 = vld [vmem:[%s7 + $0x20] sm:$0xff]
  %v1124 = vld [vmem:[%s7 + $0x28] sm:$0xff]
  %v1125 = vld [vmem:[%s7 + $0x30] sm:$0xff]
  %v1126 = vld [vmem:[%s7 + $0x38] sm:$0xff]
  %v1127 = vld [vmem:[%s7 + $0x40] sm:$0xff]
  %v1128 = vld [vmem:[%s7 + $0x48] sm:$0xff]
  %v1129 = vld [vmem:[%s7 + $0x50] sm:$0xff]
  %v1130 = vld [vmem:[%s7 + $0x58] sm:$0xff]
  %v1131 = vld [vmem:[%s7 + $0x60] sm:$0xff]
  %v1132 = vld [vmem:[%s7 + $0x68] sm:$0xff]
  %v1133 = vld [vmem:[%s7 + $0x70] sm:$0xff]
  %v1134 = vld [vmem:[%s7 + $0x78] sm:$0xff]
  %v1135 = vld [vmem:[%s8] sm:$0x1]
  %v1137 = vlaneseq
  %v1138 = vshrl.u32 %v1137, 7
  %v1139 = vsub.s32 0, %v1138
  %v1140 = vrot.slane %v1135, %v1139
  %1142 = vmatprep.subr.mxu0 0.0
  %1143 = vmatpush1.msra.mxu0 %v1119
  %1144 = vmatprep.subr.mxu0 0.0
  %1145 = vmatpush1.msra.mxu0 %v1120
  %1146 = vmatprep.subr.mxu0 0.0
  %1147 = vmatpush1.msra.mxu0 %v1121
  %1148 = vmatprep.subr.mxu0 0.0
  %1149 = vmatpush1.msra.mxu0 %v1122
  %1150 = vmatprep.subr.mxu0 0.0
  %1151 = vmatpush1.msra.mxu0 %v1123
  %1152 = vmatprep.subr.mxu0 0.0
  %1153 = vmatpush1.msra.mxu0 %v1124
  %1154 = vmatprep.subr.mxu0 0.0
  %1155 = vmatpush1.msra.mxu0 %v1125
  %1156 = vmatprep.subr.mxu0 0.0
  %1157 = vmatpush1.msra.mxu0 %v1126
  %1158 = vmatprep.subr.mxu0 0.0
  %1159 = vmatpush1.msra.mxu0 %v1127
  %1160 = vmatprep.subr.mxu0 0.0
  %1161 = vmatpush1.msra.mxu0 %v1128
  %1162 = vmatprep.subr.mxu0 0.0
  %1163 = vmatpush1.msra.mxu0 %v1129
  %1164 = vmatprep.subr.mxu0 0.0
  %1165 = vmatpush1.msra.mxu0 %v1130
  %1166 = vmatprep.subr.mxu0 0.0
  %1167 = vmatpush1.msra.mxu0 %v1131
  %1168 = vmatprep.subr.mxu0 0.0
  %1169 = vmatpush1.msra.mxu0 %v1132
  %1170 = vmatprep.subr.mxu0 0.0
  %1171 = vmatpush1.msra.mxu0 %v1133
  %1172 = vmatprep.subr.mxu0 0.0
  %1173 = vmatpush1.msra.mxu0 %v1134
  %1174 = vmatprep.subr.mxu0 0.0
  %1175 = vmatpush1.msra.mxu0 0.0
  %1176 = vmatprep.subr.mxu0 0.0
  %1177 = vmatpush1.msra.mxu0 0.0
  %1178 = vmatprep.subr.mxu0 0.0
  %1179 = vmatpush1.msra.mxu0 0.0
  %1180 = vmatprep.subr.mxu0 0.0
  %1181 = vmatpush1.msra.mxu0 0.0
  %1182 = vmatprep.subr.mxu0 0.0
  %1183 = vmatpush1.msra.mxu0 0.0
  %1184 = vmatprep.subr.mxu0 0.0
  %1185 = vmatpush1.msra.mxu0 0.0
  %1186 = vmatprep.subr.mxu0 0.0
  %1187 = vmatpush1.msra.mxu0 0.0
  %1188 = vmatprep.subr.mxu0 0.0
  %1189 = vmatpush1.msra.mxu0 0.0
  %1190 = vmatprep.subr.mxu0 0.0
  %1191 = vmatpush1.msra.mxu0 0.0
  %1192 = vmatprep.subr.mxu0 0.0
  %1193 = vmatpush1.msra.mxu0 0.0
  %1194 = vmatprep.subr.mxu0 0.0
  %1195 = vmatpush1.msra.mxu0 0.0
  %1196 = vmatprep.subr.mxu0 0.0
  %1197 = vmatpush1.msra.mxu0 0.0
  %1198 = vmatprep.subr.mxu0 0.0
  %1199 = vmatpush1.msra.mxu0 0.0
  %1200 = vmatprep.subr.mxu0 0.0
  %1201 = vmatpush1.msra.mxu0 0.0
  %1202 = vmatprep.subr.mxu0 0.0
  %1203 = vmatpush1.msra.mxu0 0.0
  %1204 = vmatprep.subr.mxu0 0.0
  %1205 = vmatpush1.msra.mxu0 0.0
  %1206 = vmatprep.mubr.f32.mxu0 0.0
  %1207 = vmatmul.mubr.f32.gmra.mrb[0].mxu0 %v1081
  %v1208 = vpop.f32.mrb[0].mxu0
  %v1209 = vadd.f32 %v1140, %v1208
  %v1210 = vpop.f32.mrb[0].mxu0
  %1211 = vmatprep.mubr.f32.mxu0 0.0
  %1212 = vmatmul.mubr.f32.gmra.mrb[0].mxu0 %v1082
  %v1213 = vpop.f32.mrb[0].mxu0
  %v1214 = vadd.f32 %v1140, %v1213
  %v1215 = vpop.f32.mrb[0].mxu0
  %1216 = vmatprep.mubr.f32.mxu0 0.0
  %1217 = vmatmul.mubr.f32.gmra.mrb[0].mxu0 %v1083
  %v1218 = vpop.f32.mrb[0].mxu0
  %v1219 = vadd.f32 %v1140, %v1218
  %v1220 = vpop.f32.mrb[0].mxu0
  %1221 = vmatprep.mubr.f32.mxu0 0.0
  %1222 = vmatmul.mubr.f32.gmra.mrb[0].mxu0 %v1084
  %v1223 = vpop.f32.mrb[0].mxu0
  %v1224 = vadd.f32 %v1140, %v1223
  %v1225 = vpop.f32.mrb[0].mxu0
  %1226 = vmatprep.mubr.f32.mxu0 0.0
  %1227 = vmatmul.mubr.f32.gmra.mrb[0].mxu0 %v1085
  %v1228 = vpop.f32.mrb[0].mxu0
  %v1229 = vadd.f32 %v1140, %v1228
  %v1230 = vpop.f32.mrb[0].mxu0
  %1231 = vmatprep.mubr.f32.mxu0 0.0
  %1232 = vmatmul.mubr.f32.gmra.mrb[0].mxu0 %v1086
  %v1233 = vpop.f32.mrb[0].mxu0
  %v1234 = vadd.f32 %v1140, %v1233
  %v1235 = vpop.f32.mrb[0].mxu0
  %1236 = vmatprep.mubr.f32.mxu0 0.0
  %1237 = vmatmul.mubr.f32.gmra.mrb[0].mxu0 %v1087
  %v1238 = vpop.f32.mrb[0].mxu0
  %v1239 = vadd.f32 %v1140, %v1238
  %v1240 = vpop.f32.mrb[0].mxu0
  %1241 = vmatprep.mubr.f32.mxu0 0.0
  %1242 = vmatmul.mubr.f32.gmra.mrb[0].mxu0 %v1088
  %v1243 = vpop.f32.mrb[0].mxu0
  %v1244 = vadd.f32 %v1140, %v1243
  %v1245 = vpop.f32.mrb[0].mxu0
  %1246 = vmatprep.mubr.f32.mxu0 0.0
  %1247 = vmatmul.mubr.f32.gmra.mrb[0].mxu0 %v1089
  %v1248 = vpop.f32.mrb[0].mxu0
  %v1249 = vadd.f32 %v1140, %v1248
  %v1250 = vpop.f32.mrb[0].mxu0
  %1251 = vmatprep.mubr.f32.mxu0 0.0
  %1252 = vmatmul.mubr.f32.gmra.mrb[0].mxu0 %v1090
  %v1253 = vpop.f32.mrb[0].mxu0
  %v1254 = vadd.f32 %v1140, %v1253
  %v1255 = vpop.f32.mrb[0].mxu0
  %1256 = vmatprep.mubr.f32.mxu0 0.0
  %1257 = vmatmul.mubr.f32.gmra.mrb[0].mxu0 %v1091
  %v1258 = vpop.f32.mrb[0].mxu0
  %v1259 = vadd.f32 %v1140, %v1258
  %v1260 = vpop.f32.mrb[0].mxu0
  %1261 = vmatprep.mubr.f32.mxu0 0.0
  %1262 = vmatmul.mubr.f32.gmra.mrb[0].mxu0 %v1092
  %v1263 = vpop.f32.mrb[0].mxu0
  %v1264 = vadd.f32 %v1140, %v1263
  %v1265 = vpop.f32.mrb[0].mxu0
  %1266 = vmatprep.mubr.f32.mxu0 0.0
  %1267 = vmatmul.mubr.f32.gmra.mrb[0].mxu0 %v1093
  %v1268 = vpop.f32.mrb[0].mxu0
  %v1269 = vadd.f32 %v1140, %v1268
  %v1270 = vpop.f32.mrb[0].mxu0
  %1271 = vmatprep.mubr.f32.mxu0 0.0
  %1272 = vmatmul.mubr.f32.gmra.mrb[0].mxu0 %v1094
  %v1273 = vpop.f32.mrb[0].mxu0
  %v1274 = vadd.f32 %v1140, %v1273
  %v1275 = vpop.f32.mrb[0].mxu0
  %1276 = vmatprep.mubr.f32.mxu0 0.0
  %1277 = vmatmul.mubr.f32.gmra.mrb[0].mxu0 %v1095
  %v1278 = vpop.f32.mrb[0].mxu0
  %v1279 = vadd.f32 %v1140, %v1278
  %v1280 = vpop.f32.mrb[0].mxu0
  %1281 = vmatprep.mubr.f32.mxu0 0.0
  %1282 = vmatmul.mubr.f32.gmra.mrb[0].mxu0 %v1096
  %v1283 = vpop.f32.mrb[0].mxu0
  %v1284 = vadd.f32 %v1140, %v1283
  %v1285 = vpop.f32.mrb[0].mxu0
  %1286 = vmatprep.mubr.f32.mxu0 0.0
  %1287 = vmatmul.mubr.f32.gmra.mrb[0].mxu0 %v1097
  %v1288 = vpop.f32.mrb[0].mxu0
  %v1289 = vadd.f32 %v1140, %v1288
  %v1290 = vpop.f32.mrb[0].mxu0
  %1291 = vmatprep.mubr.f32.mxu0 0.0
  %1292 = vmatmul.mubr.f32.gmra.mrb[0].mxu0 %v1098
  %v1293 = vpop.f32.mrb[0].mxu0
  %v1294 = vadd.f32 %v1140, %v1293
  %v1295 = vpop.f32.mrb[0].mxu0
  %1296 = vmatprep.mubr.f32.mxu0 0.0
  %1297 = vmatmul.mubr.f32.gmra.mrb[0].mxu0 %v1099
  %v1298 = vpop.f32.mrb[0].mxu0
  %v1299 = vadd.f32 %v1140, %v1298
  %v1300 = vpop.f32.mrb[0].mxu0
  %1301 = vmatprep.mubr.f32.mxu0 0.0
  %1302 = vmatmul.mubr.f32.gmra.mrb[0].mxu0 %v1100
  %v1303 = vpop.f32.mrb[0].mxu0
  %v1304 = vadd.f32 %v1140, %v1303
  %v1305 = vpop.f32.mrb[0].mxu0
  %1306 = vmatprep.mubr.f32.mxu0 0.0
  %1307 = vmatmul.mubr.f32.gmra.mrb[0].mxu0 %v1101
  %v1308 = vpop.f32.mrb[0].mxu0
  %v1309 = vadd.f32 %v1140, %v1308
  %v1310 = vpop.f32.mrb[0].mxu0
  %1311 = vmatprep.mubr.f32.mxu0 0.0
  %1312 = vmatmul.mubr.f32.gmra.mrb[0].mxu0 %v1102
  %v1313 = vpop.f32.mrb[0].mxu0
  %v1314 = vadd.f32 %v1140, %v1313
  %v1315 = vpop.f32.mrb[0].mxu0
  %1316 = vmatprep.mubr.f32.mxu0 0.0
  %1317 = vmatmul.mubr.f32.gmra.mrb[0].mxu0 %v1103
  %v1318 = vpop.f32.mrb[0].mxu0
  %v1319 = vadd.f32 %v1140, %v1318
  %v1320 = vpop.f32.mrb[0].mxu0
  %1321 = vmatprep.mubr.f32.mxu0 0.0
  %1322 = vmatmul.mubr.f32.gmra.mrb[0].mxu0 %v1104
  %v1323 = vpop.f32.mrb[0].mxu0
  %v1324 = vadd.f32 %v1140, %v1323
  %v1325 = vpop.f32.mrb[0].mxu0
  %1326 = vmatprep.mubr.f32.mxu0 0.0
  %1327 = vmatmul.mubr.f32.gmra.mrb[0].mxu0 %v1105
  %v1328 = vpop.f32.mrb[0].mxu0
  %v1329 = vadd.f32 %v1140, %v1328
  %v1330 = vpop.f32.mrb[0].mxu0
  %1331 = vmatprep.mubr.f32.mxu0 0.0
  %1332 = vmatmul.mubr.f32.gmra.mrb[0].mxu0 %v1106
  %v1333 = vpop.f32.mrb[0].mxu0
  %v1334 = vadd.f32 %v1140, %v1333
  %v1335 = vpop.f32.mrb[0].mxu0
  %1336 = vmatprep.mubr.f32.mxu0 0.0
  %1337 = vmatmul.mubr.f32.gmra.mrb[0].mxu0 %v1107
  %v1338 = vpop.f32.mrb[0].mxu0
  %v1339 = vadd.f32 %v1140, %v1338
  %v1340 = vpop.f32.mrb[0].mxu0
  %1341 = vmatprep.mubr.f32.mxu0 0.0
  %1342 = vmatmul.mubr.f32.gmra.mrb[0].mxu0 %v1108
  %v1343 = vpop.f32.mrb[0].mxu0
  %v1344 = vadd.f32 %v1140, %v1343
  %v1345 = vpop.f32.mrb[0].mxu0
  %1346 = vmatprep.mubr.f32.mxu0 0.0
  %1347 = vmatmul.mubr.f32.gmra.mrb[0].mxu0 %v1109
  %v1348 = vpop.f32.mrb[0].mxu0
  %v1349 = vadd.f32 %v1140, %v1348
  %v1350 = vpop.f32.mrb[0].mxu0
  %1351 = vmatprep.mubr.f32.mxu0 0.0
  %1352 = vmatmul.mubr.f32.gmra.mrb[0].mxu0 %v1110
  %v1353 = vpop.f32.mrb[0].mxu0
  %v1354 = vadd.f32 %v1140, %v1353
  %v1355 = vpop.f32.mrb[0].mxu0
  %1356 = vmatprep.mubr.f32.mxu0 0.0
  %1357 = vmatmul.mubr.f32.gmra.mrb[0].mxu0 %v1111
  %v1358 = vpop.f32.mrb[0].mxu0
  %v1359 = vadd.f32 %v1140, %v1358
  %v1360 = vpop.f32.mrb[0].mxu0
  %1361 = vmatprep.mubr.f32.mxu0 0.0
  %1362 = vmatmul.mubr.f32.gmra.mrb[0].mxu0 %v1112
  %v1363 = vpop.f32.mrb[0].mxu0
  %v1364 = vadd.f32 %v1140, %v1363
  %v1365 = vpop.f32.mrb[0].mxu0
  %1366 = vmatprep.mubr.f32.mxu0 0.0
  %1367 = vmatmul.mubr.f32.gmra.mrb[0].mxu0 %v1113
  %v1368 = vpop.f32.mrb[0].mxu0
  %v1369 = vadd.f32 %v1140, %v1368
  %v1370 = vpop.f32.mrb[0].mxu0
  %1371 = vmatprep.mubr.f32.mxu0 0.0
  %1372 = vmatmul.mubr.f32.gmra.mrb[0].mxu0 %v1114
  %v1373 = vpop.f32.mrb[0].mxu0
  %v1374 = vadd.f32 %v1140, %v1373
  %v1375 = vpop.f32.mrb[0].mxu0
  %1376 = vmatprep.mubr.f32.mxu0 0.0
  %1377 = vmatmul.mubr.f32.gmra.mrb[0].mxu0 %v1115
  %v1378 = vpop.f32.mrb[0].mxu0
  %v1379 = vadd.f32 %v1140, %v1378
  %v1380 = vpop.f32.mrb[0].mxu0
  %1381 = vmatprep.mubr.f32.mxu0 0.0
  %1382 = vmatmul.mubr.f32.gmra.mrb[0].mxu0 %v1116
  %v1383 = vpop.f32.mrb[0].mxu0
  %v1384 = vadd.f32 %v1140, %v1383
  %v1385 = vpop.f32.mrb[0].mxu0
  %1386 = vmatprep.mubr.f32.mxu0 0.0
  %1387 = vmatmul.mubr.f32.gmra.mrb[0].mxu0 %v1117
  %v1388 = vpop.f32.mrb[0].mxu0
  %v1389 = vadd.f32 %v1140, %v1388
  %v1390 = vpop.f32.mrb[0].mxu0
  %1391 = vmatprep.mubr.f32.mxu0 0.0
  %1392 = vmatmul.mubr.f32.gmra.mrb[0].mxu0 %v1118
  %v1393 = vpop.f32.mrb[0].mxu0
  %v1394 = vadd.f32 %v1140, %v1393
  %v1395 = vpop.f32.mrb[0].mxu0
  %1396 = vdwg.mxu0
  %1397 = vst [vmem:[%s9] sm:$0xff] %v1209
  %1398 = vst [vmem:[%s9 + $0x8] sm:$0xff] %v1214
  %1399 = vst [vmem:[%s9 + $0x10] sm:$0xff] %v1219
  %1400 = vst [vmem:[%s9 + $0x18] sm:$0xff] %v1224
  %1401 = vst [vmem:[%s9 + $0x20] sm:$0xff] %v1229
  %1402 = vst [vmem:[%s9 + $0x28] sm:$0xff] %v1234
  %1403 = vst [vmem:[%s9 + $0x30] sm:$0xff] %v1239
  %1404 = vst [vmem:[%s9 + $0x38] sm:$0xff] %v1244
  %1405 = vst [vmem:[%s9 + $0x40] sm:$0xff] %v1249
  %1406 = vst [vmem:[%s9 + $0x48] sm:$0xff] %v1254
  %1407 = vst [vmem:[%s9 + $0x50] sm:$0xff] %v1259
  %1408 = vst [vmem:[%s9 + $0x58] sm:$0xff] %v1264
  %1409 = vst [vmem:[%s9 + $0x60] sm:$0xff] %v1269
  %1410 = vst [vmem:[%s9 + $0x68] sm:$0xff] %v1274
  %1411 = vst [vmem:[%s9 + $0x70] sm:$0xff] %v1279
  %1412 = vst [vmem:[%s9 + $0x78] sm:$0xff] %v1284
  %1413 = vst [vmem:[%s9 + $0x80] sm:$0xff] %v1289
  %1414 = vst [vmem:[%s9 + $0x88] sm:$0xff] %v1294
  %1415 = vst [vmem:[%s9 + $0x90] sm:$0xff] %v1299
  %1416 = vst [vmem:[%s9 + $0x98] sm:$0xff] %v1304
  %1417 = vst [vmem:[%s9 + $0xa0] sm:$0xff] %v1309
  %1418 = vst [vmem:[%s9 + $0xa8] sm:$0xff] %v1314
  %1419 = vst [vmem:[%s9 + $0xb0] sm:$0xff] %v1319
  %1420 = vst [vmem:[%s9 + $0xb8] sm:$0xff] %v1324
  %1421 = vst [vmem:[%s9 + $0xc0] sm:$0xff] %v1329
  %1422 = vst [vmem:[%s9 + $0xc8] sm:$0xff] %v1334
  %1423 = vst [vmem:[%s9 + $0xd0] sm:$0xff] %v1339
  %1424 = vst [vmem:[%s9 + $0xd8] sm:$0xff] %v1344
  %1425 = vst [vmem:[%s9 + $0xe0] sm:$0xff] %v1349
  %1426 = vst [vmem:[%s9 + $0xe8] sm:$0xff] %v1354
  %1427 = vst [vmem:[%s9 + $0xf0] sm:$0xff] %v1359
  %1428 = vst [vmem:[%s9 + $0xf8] sm:$0xff] %v1364
  %1429 = vst [vmem:[%s9 + $0x100] sm:$0xff] %v1369
  %1430 = vst [vmem:[%s9 + $0x108] sm:$0xff] %v1374
  %1431 = vst [vmem:[%s9 + $0x110] sm:$0xff] %v1379
  %1432 = vst [vmem:[%s9 + $0x118] sm:$0xff] %v1384
  %1433 = vst [vmem:[%s9 + $0x120] sm:$0xff] %v1389
  %1434 = vst [vmem:[%s9 + $0x128] sm:$0xff] %v1394
  // Predicated region
  $region38: #{mlp_forward.1} parent=0 // pred_check
    _
  $region39: #{mlp_forward.1} parent=0 // pred_check_branch
    %1436 = sbr.rel (0) target = $region41
  $region40: #{mlp_forward.1} parent=0 // pred_region
    _
  $region41: #{mlp_forward.1} parent=0 // pred_fallthru
    _
  // Predicated region
  $region42: #{mlp_forward.1} parent=0 // pred_check
    _
  $region43: #{mlp_forward.1} parent=0 // pred_check_branch
    %1438 = sbr.rel (0) target = $region45
  $region44: #{mlp_forward.1} parent=0 // pred_region
    _
  $region45: #{mlp_forward.1} parent=0 // pred_fallthru
    _

</llo_original>
